<compile_context>
chip_gen: v7x
topology: tpu7x:2x2x1
jax: 0.10.0
libtpu: 0.0.40
codegen_flags: <defaults>
</compile_context>

<pallas_src>
import functools

import jax
import jax.numpy as jnp
from jax.experimental import pallas as pl
from jax.experimental.pallas import tpu as pltpu


def _fagcn_kernel(n_layer, eps, bsub, n_nodes,
                  feat_ref, adj_ref,
                  lin_w_ref, lin_b_ref,
                  gate_w_ref, gate_b_ref,
                  fc_w_ref, fc_b_ref,
                  out_ref):
    f32 = jnp.float32
    bf16 = jnp.bfloat16
    N = n_nodes
    M = bsub * N
    F_dim = feat_ref.shape[-1]

    # x = relu(feature @ lin_w + lin_b); batch folded into the M dim so the
    # MXU sees one [Bsub*N, F] @ [F, H] matmul.  (dropout identity, eval mode)
    feat = feat_ref[...].reshape(M, F_dim)                       # bf16 [M, F]
    x = jnp.dot(feat, lin_w_ref[...], preferred_element_type=f32)
    x = jnp.maximum(x + lin_b_ref[...], 0.0)                     # f32 [M, H]
    eps_h0 = eps * x                                             # residual, hoisted

    adj = adj_ref[...]                                           # [Bsub, N, N]
    adj_is_bf16 = adj.dtype == bf16

    for l in range(n_layer):                                     # static unroll (small L)
        x16 = x.astype(bf16)
        # Gate: one [M,H]@[H,2] MXU matmul for all Bsub graphs at once
        # (replaces two cross-lane XLU reductions per layer).
        st = jnp.dot(x16, gate_w_ref[:, 2 * l:2 * l + 2],
                     preferred_element_type=f32)                 # [M, 2] f32
        b_l = gate_b_ref[l]                                      # SMEM scalar read
        agg_rows = []
        for b in range(bsub):                                    # per-graph [N,N] block
            r0 = b * N
            s_b = st[r0:r0 + N, 0:1] + b_l                       # bias folded on [N,1]
            t_b = st[r0:r0 + N, 1:2]                             # [N, 1]
            g_b = jnp.tanh(s_b + t_b.T)                          # [N, N] f32 (EUP)
            if adj_is_bf16:                                      # v6e/v7x: bf16 VALU
                lhs = g_b.astype(bf16) * adj[b]
            else:                                                # v5e: f32 VALU path
                lhs = (g_b * adj[b]).astype(bf16)
            agg_rows.append(jnp.dot(lhs, x16[r0:r0 + N, :],
                                    preferred_element_type=f32))
        agg = jnp.concatenate(agg_rows, axis=0)                  # [M, H] f32
        x = jnp.maximum(agg, 0.0) + eps_h0                       # relu(.) + eps*h0

    # logits over padded (lane-dense) class axis; padded fc bias = -1e30 so
    # the extra lanes never win the max nor contribute to the logsumexp.
    logits = jnp.dot(x.astype(bf16), fc_w_ref[...],
                     preferred_element_type=f32) + fc_b_ref[...]
    m = jnp.max(logits, axis=1, keepdims=True)
    lse = m + jnp.log(jnp.sum(jnp.exp(logits - m), axis=1, keepdims=True))
    out_ref[...] = (logits - lse).reshape(bsub, N, -1)


def _use_bf16_adj():
    """bf16 elementwise adj multiply only where the VPU has a bf16 path."""
    try:
        kind = jax.devices()[0].device_kind.lower()
    except Exception:
        return False
    return ("v6" in kind) or ("v7" in kind) or ("7x" in kind)


def fagcn_forward(feature, adj, params, *, n_layer, eps):
    """feature: [N,F] or [B,N,F]; adj: [N,N] or [B,N,N]."""
    squeeze = feature.ndim == 2
    if squeeze:
        feature, adj = feature[None], adj[None]
    B, N, F_dim = feature.shape
    H = params["lin_w"].shape[1]
    C = params["fc_w"].shape[1]
    C_PAD = 128                                            # lane-dense output
    L = n_layer
    bf16 = jnp.bfloat16
    f32 = jnp.float32

    # Bsub graphs per grid step: fills the MXU M dim (Bsub*N rows) and
    # amortizes ~0.35 us/step overhead; keeps the grid even for v7x's 2 TCs.
    bsub = 2 if (B % 2 == 0) else 1
    grid_b = B // bsub

    # Wrapper-side bf16 pre-cast of static MXU operands (and the feature).
    feat16 = feature.astype(bf16)
    lin_w16 = params["lin_w"].astype(bf16)
    lin_b = params["lin_b"].astype(f32)

    # Gate weights packed lane-dense as [H, 2L]: columns (2l, 2l+1) = (w1_l, w2_l).
    gate_w = jnp.stack([params["gate_w1"], params["gate_w2"]], axis=-1)   # [L, H, 2]
    gate_w = jnp.transpose(gate_w, (1, 0, 2)).reshape(H, 2 * L).astype(bf16)
    gate_b = params["gate_b"].reshape(-1).astype(f32)                     # [L] -> SMEM

    fc_w_pad = jnp.zeros((H, C_PAD), bf16).at[:, :C].set(params["fc_w"].astype(bf16))
    fc_b_pad = jnp.full((1, C_PAD), -1e30, f32).at[:, :C].set(params["fc_b"])

    adj_in = adj.astype(bf16) if _use_bf16_adj() else adj.astype(f32)

    kernel = functools.partial(_fagcn_kernel, n_layer, eps, bsub, N)

    out = pl.pallas_call(
        kernel,
        out_shape=jax.ShapeDtypeStruct((B, N, C_PAD), jnp.float32),
        grid=(grid_b,),
        in_specs=[
            pl.BlockSpec((bsub, N, F_dim), lambda b: (b, 0, 0)),        # feature (bf16)
            pl.BlockSpec((bsub, N, N), lambda b: (b, 0, 0)),            # adj
            pl.BlockSpec((F_dim, H), lambda b: (0, 0)),                 # lin_w (bf16)
            pl.BlockSpec((1, H), lambda b: (0, 0)),                     # lin_b (f32)
            pl.BlockSpec((H, 2 * L), lambda b: (0, 0)),                 # gate_w (bf16)
            pl.BlockSpec(memory_space=pltpu.MemorySpace.SMEM),          # gate_b (f32)
            pl.BlockSpec((H, C_PAD), lambda b: (0, 0)),                 # fc_w (bf16, padded)
            pl.BlockSpec((1, C_PAD), lambda b: (0, 0)),                 # fc_b (f32, padded)
        ],
        out_specs=pl.BlockSpec((bsub, N, C_PAD), lambda b: (b, 0, 0)),
        compiler_params=pltpu.CompilerParams(
            dimension_semantics=("parallel",)),            # shards graph pairs across TCs
    )(feat16, adj_in, lin_w16, lin_b, gate_w, gate_b, fc_w_pad, fc_b_pad)

    out = out[..., :C]                                     # drop lane padding
    return out[0] if squeeze else out


def fagcn_reference(feature, adj, params, *, n_layer, eps):
    """Plain-JAX f32 reference (mirrors the PyTorch forward, eval mode)."""
    x = jnp.maximum(feature @ params["lin_w"] + params["lin_b"], 0.0)
    h0 = x
    for l in range(n_layer):
        s = jnp.sum(x * params["gate_w1"][l][None, :], axis=1, keepdims=True)
        t = jnp.sum(x * params["gate_w2"][l][None, :], axis=1, keepdims=True)
        g = jnp.tanh(s + t.T + params["gate_b"][0, l])
        agg = (g * adj) @ x
        x = jnp.maximum(agg, 0.0) + eps * h0
    logits = x @ params["fc_w"] + params["fc_b"]
    return jax.nn.log_softmax(logits, axis=1)


def init_params(key, n_feature, n_hidden, n_class, n_layer):
    ks = jax.random.split(key, 7)
    scale = 0.1
    return {
        "lin_w":  scale * jax.random.normal(ks[0], (n_feature, n_hidden), jnp.float32),
        "lin_b":  scale * jax.random.normal(ks[1], (1, n_hidden), jnp.float32),
        "gate_w1": scale * jax.random.normal(ks[2], (n_layer, n_hidden), jnp.float32),
        "gate_w2": scale * jax.random.normal(ks[3], (n_layer, n_hidden), jnp.float32),
        "gate_b":  scale * jax.random.normal(ks[4], (1, n_layer), jnp.float32),
        "fc_w":   scale * jax.random.normal(ks[5], (n_hidden, n_class), jnp.float32),
        "fc_b":   scale * jax.random.normal(ks[6], (1, n_class), jnp.float32),
    }


def _make_graph(key, n):
    k_adj, k_feat = jax.random.split(key)
    a = (jax.random.uniform(k_adj, (n, n)) < 0.1).astype(jnp.float32)
    a = jnp.maximum(a, a.T) + jnp.eye(n, dtype=jnp.float32)
    d_inv_sqrt = 1.0 / jnp.sqrt(jnp.sum(a, axis=1))
    adj = a * d_inv_sqrt[:, None] * d_inv_sqrt[None, :]
    feat = jax.random.normal(k_feat, (n, 16), jnp.float32)
    return feat, adj


if __name__ == "__main__":
    B, N, F_DIM, H, C, L = 4, 64, 16, 32, 8, 2
    eps = 0.3
    # dropout = 0.4  # identity in eval mode (training=False)

    key = jax.random.PRNGKey(0)
    k_par, *k_graphs = jax.random.split(key, 1 + B)

    feats, adjs = [], []
    for kg in k_graphs:
        f, a = _make_graph(kg, N)
        feats.append(f)
        adjs.append(a)
    feature = jnp.stack(feats)      # [B, N, F]
    adj = jnp.stack(adjs)           # [B, N, N]

    params = init_params(k_par, F_DIM, H, C, L)

    out = fagcn_forward(feature, adj, params, n_layer=L, eps=eps)
    out = jax.block_until_ready(out)

    ref = jax.vmap(
        lambda f, a: fagcn_reference(f, a, params, n_layer=L, eps=eps)
    )(feature, adj)

    assert out.shape == (B, N, C)
    assert bool(jnp.all(jnp.isfinite(out)))
    # bf16 MXU operands / bf16 feature+weights with f32 accumulation -> relaxed tol.
    assert bool(jnp.allclose(out, ref, rtol=2e-2, atol=2e-2)), "mismatch vs reference"

    print("KERNEL_OK")
</pallas_src>

<mosaic_0001>
module attributes {stable_mosaic.version = 11 : i64} {
  func.func @_fagcn_kernel(%arg0: i32, %arg1: memref<2x64x16xbf16, #tpu.memory_space<vmem>>, %arg2: memref<2x64x64xf32, #tpu.memory_space<vmem>>, %arg3: memref<16x32xbf16, #tpu.memory_space<vmem>>, %arg4: memref<1x32xf32, #tpu.memory_space<vmem>>, %arg5: memref<32x4xbf16, #tpu.memory_space<vmem>>, %arg6: memref<2xf32, #tpu.memory_space<smem>>, %arg7: memref<32x128xbf16, #tpu.memory_space<vmem>>, %arg8: memref<1x128xf32, #tpu.memory_space<vmem>>, %arg9: memref<2x64x128xf32, #tpu.memory_space<vmem>>) attributes {dimension_semantics = [#tpu.dimension_semantics<parallel>], iteration_bounds = array<i64: 2>, scalar_prefetch = 0 : i64, scratch_operands = 0 : i64, tpu.core_type = #tpu.core_type<tc>, window_params = [{transform_indices = @transform_0, window_bounds = array<i64: 2, 64, 16>}, {transform_indices = @transform_1, window_bounds = array<i64: 2, 64, 64>}, {pipeline_mode = #tpu.pipeline_mode<synchronous>, transform_indices = @transform_2, window_bounds = array<i64: 16, 32>}, {pipeline_mode = #tpu.pipeline_mode<synchronous>, transform_indices = @transform_3, window_bounds = array<i64: 1, 32>}, {pipeline_mode = #tpu.pipeline_mode<synchronous>, transform_indices = @transform_4, window_bounds = array<i64: 32, 4>}, {transform_indices = @transform_5, window_bounds = array<i64: 2>}, {pipeline_mode = #tpu.pipeline_mode<synchronous>, transform_indices = @transform_6, window_bounds = array<i64: 32, 128>}, {pipeline_mode = #tpu.pipeline_mode<synchronous>, transform_indices = @transform_7, window_bounds = array<i64: 1, 128>}, {transform_indices = @transform_8, window_bounds = array<i64: 2, 64, 128>}]} {
    %c0 = arith.constant 0 : index
    %c0_0 = arith.constant 0 : index
    %c0_1 = arith.constant 0 : index
    %0 = vector.load %arg1[%c0, %c0_0, %c0_1] : memref<2x64x16xbf16, #tpu.memory_space<vmem>>, vector<2x64x16xbf16>
    %1 = vector.shape_cast %0 : vector<2x64x16xbf16> to vector<128x16xbf16>
    %c0_2 = arith.constant 0 : index
    %c0_3 = arith.constant 0 : index
    %2 = vector.load %arg3[%c0_2, %c0_3] : memref<16x32xbf16, #tpu.memory_space<vmem>>, vector<16x32xbf16>
    %cst = arith.constant dense<0.000000e+00> : vector<128x32xf32>
    %3 = tpu.matmul %1, %2, %cst {dimension_numbers = #tpu.dot_dimension_numbers<[1], [0], [0], [1], [0, 0, 1, 1], [], []>} : vector<128x16xbf16>, vector<16x32xbf16>, vector<128x32xf32> -> vector<128x32xf32>
    %c0_4 = arith.constant 0 : index
    %c0_5 = arith.constant 0 : index
    %4 = vector.load %arg4[%c0_4, %c0_5] : memref<1x32xf32, #tpu.memory_space<vmem>>, vector<1x32xf32>
    %5 = vector.broadcast %4 : vector<1x32xf32> to vector<128x32xf32>
    %6 = arith.addf %3, %5 : vector<128x32xf32>
    %cst_6 = arith.constant 0.000000e+00 : f32
    %7 = vector.broadcast %cst_6 : f32 to vector<128x32xf32>
    %8 = arith.maximumf %6, %7 : vector<128x32xf32>
    %cst_7 = arith.constant 3.000000e-01 : f32
    %9 = vector.broadcast %cst_7 : f32 to vector<128x32xf32>
    %10 = arith.mulf %9, %8 : vector<128x32xf32>
    %c0_8 = arith.constant 0 : index
    %c0_9 = arith.constant 0 : index
    %c0_10 = arith.constant 0 : index
    %11 = vector.load %arg2[%c0_8, %c0_9, %c0_10] : memref<2x64x64xf32, #tpu.memory_space<vmem>>, vector<2x64x64xf32>
    %12 = arith.truncf %8 : vector<128x32xf32> to vector<128x32xbf16>
    %c0_11 = arith.constant 0 : index
    %c0_12 = arith.constant 0 : index
    %13 = vector.load %arg5[%c0_11, %c0_12] : memref<32x4xbf16, #tpu.memory_space<vmem>>, vector<32x2xbf16>
    %cst_13 = arith.constant dense<0.000000e+00> : vector<128x2xf32>
    %14 = tpu.matmul %12, %13, %cst_13 {dimension_numbers = #tpu.dot_dimension_numbers<[1], [0], [0], [1], [0, 0, 1, 1], [], []>} : vector<128x32xbf16>, vector<32x2xbf16>, vector<128x2xf32> -> vector<128x2xf32>
    %c0_14 = arith.constant 0 : index
    %15 = memref.load %arg6[%c0_14] : memref<2xf32, #tpu.memory_space<smem>>
    %16 = vector.extract_strided_slice %14 {offsets = [0, 0], sizes = [64, 1], strides = [1, 1]} : vector<128x2xf32> to vector<64x1xf32>
    %17 = vector.broadcast %15 : f32 to vector<64x1xf32>
    %18 = arith.addf %16, %17 : vector<64x1xf32>
    %19 = vector.extract_strided_slice %14 {offsets = [0, 1], sizes = [64, 1], strides = [1, 1]} : vector<128x2xf32> to vector<64x1xf32>
    %20 = tpu.transpose %19, [1, 0] : vector<64x1xf32> -> vector<1x64xf32>
    %21 = vector.broadcast %18 : vector<64x1xf32> to vector<64x64xf32>
    %22 = vector.broadcast %20 : vector<1x64xf32> to vector<64x64xf32>
    %23 = arith.addf %21, %22 : vector<64x64xf32>
    %24 = math.tanh %23 : vector<64x64xf32>
    %25 = vector.extract_strided_slice %11 {offsets = [0, 0, 0], sizes = [1, 64, 64], strides = [1, 1, 1]} : vector<2x64x64xf32> to vector<1x64x64xf32>
    %26 = vector.shape_cast %25 : vector<1x64x64xf32> to vector<64x64xf32>
    %27 = arith.mulf %24, %26 : vector<64x64xf32>
    %28 = arith.truncf %27 : vector<64x64xf32> to vector<64x64xbf16>
    %29 = vector.extract_strided_slice %12 {offsets = [0, 0], sizes = [64, 32], strides = [1, 1]} : vector<128x32xbf16> to vector<64x32xbf16>
    %cst_15 = arith.constant dense<0.000000e+00> : vector<64x32xf32>
    %30 = tpu.matmul %28, %29, %cst_15 {dimension_numbers = #tpu.dot_dimension_numbers<[1], [0], [0], [1], [0, 0, 1, 1], [], []>} : vector<64x64xbf16>, vector<64x32xbf16>, vector<64x32xf32> -> vector<64x32xf32>
    %31 = vector.extract_strided_slice %14 {offsets = [64, 0], sizes = [64, 1], strides = [1, 1]} : vector<128x2xf32> to vector<64x1xf32>
    %32 = vector.broadcast %15 : f32 to vector<64x1xf32>
    %33 = arith.addf %31, %32 : vector<64x1xf32>
    %34 = vector.extract_strided_slice %14 {offsets = [64, 1], sizes = [64, 1], strides = [1, 1]} : vector<128x2xf32> to vector<64x1xf32>
    %35 = tpu.transpose %34, [1, 0] : vector<64x1xf32> -> vector<1x64xf32>
    %36 = vector.broadcast %33 : vector<64x1xf32> to vector<64x64xf32>
    %37 = vector.broadcast %35 : vector<1x64xf32> to vector<64x64xf32>
    %38 = arith.addf %36, %37 : vector<64x64xf32>
    %39 = math.tanh %38 : vector<64x64xf32>
    %40 = vector.extract_strided_slice %11 {offsets = [1, 0, 0], sizes = [1, 64, 64], strides = [1, 1, 1]} : vector<2x64x64xf32> to vector<1x64x64xf32>
    %41 = vector.shape_cast %40 : vector<1x64x64xf32> to vector<64x64xf32>
    %42 = arith.mulf %39, %41 : vector<64x64xf32>
    %43 = arith.truncf %42 : vector<64x64xf32> to vector<64x64xbf16>
    %44 = vector.extract_strided_slice %12 {offsets = [64, 0], sizes = [64, 32], strides = [1, 1]} : vector<128x32xbf16> to vector<64x32xbf16>
    %cst_16 = arith.constant dense<0.000000e+00> : vector<64x32xf32>
    %45 = tpu.matmul %43, %44, %cst_16 {dimension_numbers = #tpu.dot_dimension_numbers<[1], [0], [0], [1], [0, 0, 1, 1], [], []>} : vector<64x64xbf16>, vector<64x32xbf16>, vector<64x32xf32> -> vector<64x32xf32>
    %46 = tpu.concatenate %30, %45 in 0 : vector<64x32xf32>, vector<64x32xf32> -> vector<128x32xf32>
    %cst_17 = arith.constant 0.000000e+00 : f32
    %47 = vector.broadcast %cst_17 : f32 to vector<128x32xf32>
    %48 = arith.maximumf %46, %47 : vector<128x32xf32>
    %49 = arith.addf %48, %10 : vector<128x32xf32>
    %50 = arith.truncf %49 : vector<128x32xf32> to vector<128x32xbf16>
    %c0_18 = arith.constant 0 : index
    %c2 = arith.constant 2 : index
    %51 = vector.load %arg5[%c0_18, %c2] : memref<32x4xbf16, #tpu.memory_space<vmem>>, vector<32x2xbf16>
    %cst_19 = arith.constant dense<0.000000e+00> : vector<128x2xf32>
    %52 = tpu.matmul %50, %51, %cst_19 {dimension_numbers = #tpu.dot_dimension_numbers<[1], [0], [0], [1], [0, 0, 1, 1], [], []>} : vector<128x32xbf16>, vector<32x2xbf16>, vector<128x2xf32> -> vector<128x2xf32>
    %c1 = arith.constant 1 : index
    %53 = memref.load %arg6[%c1] : memref<2xf32, #tpu.memory_space<smem>>
    %54 = vector.extract_strided_slice %52 {offsets = [0, 0], sizes = [64, 1], strides = [1, 1]} : vector<128x2xf32> to vector<64x1xf32>
    %55 = vector.broadcast %53 : f32 to vector<64x1xf32>
    %56 = arith.addf %54, %55 : vector<64x1xf32>
    %57 = vector.extract_strided_slice %52 {offsets = [0, 1], sizes = [64, 1], strides = [1, 1]} : vector<128x2xf32> to vector<64x1xf32>
    %58 = tpu.transpose %57, [1, 0] : vector<64x1xf32> -> vector<1x64xf32>
    %59 = vector.broadcast %56 : vector<64x1xf32> to vector<64x64xf32>
    %60 = vector.broadcast %58 : vector<1x64xf32> to vector<64x64xf32>
    %61 = arith.addf %59, %60 : vector<64x64xf32>
    %62 = math.tanh %61 : vector<64x64xf32>
    %63 = vector.extract_strided_slice %11 {offsets = [0, 0, 0], sizes = [1, 64, 64], strides = [1, 1, 1]} : vector<2x64x64xf32> to vector<1x64x64xf32>
    %64 = vector.shape_cast %63 : vector<1x64x64xf32> to vector<64x64xf32>
    %65 = arith.mulf %62, %64 : vector<64x64xf32>
    %66 = arith.truncf %65 : vector<64x64xf32> to vector<64x64xbf16>
    %67 = vector.extract_strided_slice %50 {offsets = [0, 0], sizes = [64, 32], strides = [1, 1]} : vector<128x32xbf16> to vector<64x32xbf16>
    %cst_20 = arith.constant dense<0.000000e+00> : vector<64x32xf32>
    %68 = tpu.matmul %66, %67, %cst_20 {dimension_numbers = #tpu.dot_dimension_numbers<[1], [0], [0], [1], [0, 0, 1, 1], [], []>} : vector<64x64xbf16>, vector<64x32xbf16>, vector<64x32xf32> -> vector<64x32xf32>
    %69 = vector.extract_strided_slice %52 {offsets = [64, 0], sizes = [64, 1], strides = [1, 1]} : vector<128x2xf32> to vector<64x1xf32>
    %70 = vector.broadcast %53 : f32 to vector<64x1xf32>
    %71 = arith.addf %69, %70 : vector<64x1xf32>
    %72 = vector.extract_strided_slice %52 {offsets = [64, 1], sizes = [64, 1], strides = [1, 1]} : vector<128x2xf32> to vector<64x1xf32>
    %73 = tpu.transpose %72, [1, 0] : vector<64x1xf32> -> vector<1x64xf32>
    %74 = vector.broadcast %71 : vector<64x1xf32> to vector<64x64xf32>
    %75 = vector.broadcast %73 : vector<1x64xf32> to vector<64x64xf32>
    %76 = arith.addf %74, %75 : vector<64x64xf32>
    %77 = math.tanh %76 : vector<64x64xf32>
    %78 = vector.extract_strided_slice %11 {offsets = [1, 0, 0], sizes = [1, 64, 64], strides = [1, 1, 1]} : vector<2x64x64xf32> to vector<1x64x64xf32>
    %79 = vector.shape_cast %78 : vector<1x64x64xf32> to vector<64x64xf32>
    %80 = arith.mulf %77, %79 : vector<64x64xf32>
    %81 = arith.truncf %80 : vector<64x64xf32> to vector<64x64xbf16>
    %82 = vector.extract_strided_slice %50 {offsets = [64, 0], sizes = [64, 32], strides = [1, 1]} : vector<128x32xbf16> to vector<64x32xbf16>
    %cst_21 = arith.constant dense<0.000000e+00> : vector<64x32xf32>
    %83 = tpu.matmul %81, %82, %cst_21 {dimension_numbers = #tpu.dot_dimension_numbers<[1], [0], [0], [1], [0, 0, 1, 1], [], []>} : vector<64x64xbf16>, vector<64x32xbf16>, vector<64x32xf32> -> vector<64x32xf32>
    %84 = tpu.concatenate %68, %83 in 0 : vector<64x32xf32>, vector<64x32xf32> -> vector<128x32xf32>
    %cst_22 = arith.constant 0.000000e+00 : f32
    %85 = vector.broadcast %cst_22 : f32 to vector<128x32xf32>
    %86 = arith.maximumf %84, %85 : vector<128x32xf32>
    %87 = arith.addf %86, %10 : vector<128x32xf32>
    %88 = arith.truncf %87 : vector<128x32xf32> to vector<128x32xbf16>
    %c0_23 = arith.constant 0 : index
    %c0_24 = arith.constant 0 : index
    %89 = vector.load %arg7[%c0_23, %c0_24] : memref<32x128xbf16, #tpu.memory_space<vmem>>, vector<32x128xbf16>
    %cst_25 = arith.constant dense<0.000000e+00> : vector<128x128xf32>
    %90 = tpu.matmul %88, %89, %cst_25 {dimension_numbers = #tpu.dot_dimension_numbers<[1], [0], [0], [1], [0, 0, 1, 1], [], []>} : vector<128x32xbf16>, vector<32x128xbf16>, vector<128x128xf32> -> vector<128x128xf32>
    %c0_26 = arith.constant 0 : index
    %c0_27 = arith.constant 0 : index
    %91 = vector.load %arg8[%c0_26, %c0_27] : memref<1x128xf32, #tpu.memory_space<vmem>>, vector<1x128xf32>
    %92 = vector.broadcast %91 : vector<1x128xf32> to vector<128x128xf32>
    %93 = arith.addf %90, %92 : vector<128x128xf32>
    %cst_28 = arith.constant dense<0xFF800000> : vector<128xf32>
    %94 = vector.multi_reduction <maximumf>, %93, %cst_28 [1] : vector<128x128xf32> to vector<128xf32>
    %95 = vector.shape_cast %94 : vector<128xf32> to vector<128x1xf32>
    %96 = vector.broadcast %95 : vector<128x1xf32> to vector<128x128xf32>
    %97 = arith.subf %93, %96 : vector<128x128xf32>
    %98 = math.exp %97 : vector<128x128xf32>
    %cst_29 = arith.constant dense<0.000000e+00> : vector<128xf32>
    %99 = vector.multi_reduction <add>, %98, %cst_29 [1] : vector<128x128xf32> to vector<128xf32>
    %100 = vector.shape_cast %99 : vector<128xf32> to vector<128x1xf32>
    %101 = math.log %100 : vector<128x1xf32>
    %102 = arith.addf %95, %101 : vector<128x1xf32>
    %103 = vector.broadcast %102 : vector<128x1xf32> to vector<128x128xf32>
    %104 = arith.subf %93, %103 : vector<128x128xf32>
    %105 = vector.shape_cast %104 : vector<128x128xf32> to vector<2x64x128xf32>
    %c0_30 = arith.constant 0 : index
    %c0_31 = arith.constant 0 : index
    %c0_32 = arith.constant 0 : index
    %106 = vector.load %arg9[%c0_30, %c0_31, %c0_32] : memref<2x64x128xf32, #tpu.memory_space<vmem>>, vector<2x64x128xf32>
    tpu.vector_store %arg9[%c0_30, %c0_31, %c0_32], %105 {strides = array<i32>} : memref<2x64x128xf32, #tpu.memory_space<vmem>>, vector<2x64x128xf32>,
    return
  }
  func.func @transform_0(%arg0: i32) -> (i32, i32, i32) {
    %c0_i32 = arith.constant 0 : i32
    %c0_i32_0 = arith.constant 0 : i32
    %c0_i32_1 = arith.constant 0 : i32
    return %arg0, %c0_i32, %c0_i32_0 : i32, i32, i32
  }
  func.func @transform_1(%arg0: i32) -> (i32, i32, i32) {
    %c0_i32 = arith.constant 0 : i32
    %c0_i32_0 = arith.constant 0 : i32
    %c0_i32_1 = arith.constant 0 : i32
    return %arg0, %c0_i32, %c0_i32_0 : i32, i32, i32
  }
  func.func @transform_2(%arg0: i32) -> (i32, i32) {
    %c0_i32 = arith.constant 0 : i32
    %c0_i32_0 = arith.constant 0 : i32
    %c0_i32_1 = arith.constant 0 : i32
    return %c0_i32, %c0_i32_0 : i32, i32
  }
  func.func @transform_3(%arg0: i32) -> (i32, i32) {
    %c0_i32 = arith.constant 0 : i32
    %c0_i32_0 = arith.constant 0 : i32
    %c0_i32_1 = arith.constant 0 : i32
    return %c0_i32, %c0_i32_0 : i32, i32
  }
  func.func @transform_4(%arg0: i32) -> (i32, i32) {
    %c0_i32 = arith.constant 0 : i32
    %c0_i32_0 = arith.constant 0 : i32
    %c0_i32_1 = arith.constant 0 : i32
    return %c0_i32, %c0_i32_0 : i32, i32
  }
  func.func @transform_5(%arg0: i32) -> i32 {
    %c0_i32 = arith.constant 0 : i32
    %c0_i32_0 = arith.constant 0 : i32
    return %c0_i32 : i32
  }
  func.func @transform_6(%arg0: i32) -> (i32, i32) {
    %c0_i32 = arith.constant 0 : i32
    %c0_i32_0 = arith.constant 0 : i32
    %c0_i32_1 = arith.constant 0 : i32
    return %c0_i32, %c0_i32_0 : i32, i32
  }
  func.func @transform_7(%arg0: i32) -> (i32, i32) {
    %c0_i32 = arith.constant 0 : i32
    %c0_i32_0 = arith.constant 0 : i32
    %c0_i32_1 = arith.constant 0 : i32
    return %c0_i32, %c0_i32_0 : i32, i32
  }
  func.func @transform_8(%arg0: i32) -> (i32, i32, i32) {
    %c0_i32 = arith.constant 0 : i32
    %c0_i32_0 = arith.constant 0 : i32
    %c0_i32_1 = arith.constant 0 : i32
    return %arg0, %c0_i32, %c0_i32_0 : i32, i32, i32
  }
}

</mosaic_0001>

<llo_original>
// kernel: tpu_custom_call.1
$region0: #{tpu_custom_call.1}
  #allocation0 [shape = 'u32[]', space=smem, size = 0x4, offset = 0x4, fixed_abs, tag = 'smem constant byte address 0x4 - core index']
  #allocation1 [shape = 'u32[144,128]{1,0:T(1,128)}', space=vmem, size = 0x12000, scoped, tag = 'internal scratch']
  %s0 = inlined_call_operand.vmem [shape: bf16[4,64,16], index: 0, kind: input, shape index: {}]
  %s1 = inlined_call_operand.hbm [shape: f32[4,64,64], index: 1, kind: input, shape index: {}]
  %s2 = inlined_call_operand.vmem [shape: bf16[16,32], index: 2, kind: input, shape index: {}]
  %s3 = inlined_call_operand.vmem [shape: f32[1,32], index: 3, kind: input, shape index: {}]
  %s4 = inlined_call_operand.vmem [shape: bf16[32,4], index: 4, kind: input, shape index: {}]
  %s5 = inlined_call_operand.vmem [shape: f32[2], index: 5, kind: input, shape index: {}]
  %s6 = inlined_call_operand.vmem [shape: bf16[32,128], index: 6, kind: input, shape index: {}]
  %s7 = inlined_call_operand.vmem [shape: f32[1,128], index: 7, kind: input, shape index: {}]
  %s8 = inlined_call_operand.hbm [shape: f32[4,64,128], index: 8, kind: output, shape index: {}]
  %s9 = sld [smem:[#allocation0]]
  $region73: #{tpu_custom_call.1} parent=0
    _
  %s11 = ssub.s32 1, %s9
  %s12 = scalar_select 0, %s11, %s9
  $region1: #{tpu_custom_call.1} parent=0
    #allocation2 [shape = 'u8[131072]{0}', space=vmem, size = 0x20000, scoped, tag = 'input window, operand 1']
    #allocation3 [shape = 's32[2]{0}', space=sflag, size = 0x8, scoped, tag = 'scoped memory for tpu_custom_call.1']
    #allocation4 [shape = 's32[2]{0}', space=sflag, size = 0x8, scoped, tag = 'scoped memory for tpu_custom_call.1']
    #allocation5 [shape = 's32[2]{0}', space=sflag, size = 0x8, scoped, tag = 'scoped memory for tpu_custom_call.1']
    #allocation6 [shape = 'u8[512]{0}', space=smem, size = 0x200, scoped, tag = 'input window, operand 5, single buffered']
    #allocation7 [shape = 'u8[131072]{0}', space=vmem, size = 0x20000, scoped, tag = 'output window, operand 0']
    %13 = vsyncpa [#allocation3], 0
    %s14 = scalar_lea.sflag [#allocation3], 1
    %15 = vsyncpa %s14, 0
    %16 = vsyncpa [#allocation5], 0
    %17 = vsyncpa [#allocation4], 0
    %s18 = scalar_lea.sflag [#allocation4], 1
    %19 = vsyncpa %s18, 0
    loop: start=0, step=1, limit=4
    $region2: #{tpu_custom_call.1} parent=1 // loop_pre_header
      _
    $region3: #{tpu_custom_call.1} parent=1 // loop_header
      %s21 = sphi 0, %s25
      %p22 = scmp.ge.s32.totalorder %s21, 4
      %s31 = sphi 0, %s33
      %s34 = sphi 0, %s31
      %s35 = sphi 0, %s34
      %s51 = sphi 0, %s35
      %s57 = sphi 0, %s59
      %s60 = sphi 0, %s57
      %s61 = sphi 0, %s60
      %s77 = sphi 0, %s61
      %s81 = sphi 0, %s81
      %s83 = sphi 0, %s81
      %s84 = sphi 0, %s83
      %s98 = sphi 0, %s84
      %s102 = sphi 0, %s102
      %s104 = sphi 0, %s102
      %s105 = sphi 0, %s104
      %s119 = sphi 0, %s105
      %s123 = sphi 0, %s123
      %s125 = sphi 0, %s123
      %s126 = sphi 0, %s125
      %s140 = sphi 0, %s126
      %s144 = sphi 0, %s144
      %s146 = sphi 0, %s144
      %s147 = sphi 0, %s146
      %s161 = sphi 0, %s147
      %s165 = sphi 0, %s165
      %s167 = sphi 0, %s165
      %s168 = sphi 0, %s167
      %s182 = sphi 0, %s168
      %s186 = sphi 0, %s186
      %s188 = sphi 0, %s186
      %s189 = sphi 0, %s188
      %s203 = sphi 0, %s189
      %s209 = sphi 0, %s211
      %s212 = sphi 0, %s209
      %s213 = sphi 0, %s212
      %s229 = sphi 0, %s213
    $region4: #{tpu_custom_call.1} parent=1 // loop_header_branch
      %24 = sbr.rel (%p22) target = $region8
    $region5: #{tpu_custom_call.1} parent=1 // loop_body
      %s26 = ssub.s32 %s21, 1
      %s27 = ssub.s32 %s21, 2
      %s28 = sadd.s32 %s21, 1
      %s29 = ssub.s32 %s21, %s28
      %p30 = scmp.eq.s32.totalorder %s29, 0
      %s32 = sadd.s32 %s31, 1
      %s33 = scalar_select %p30, %s31, %s32
      %p36 = pneg %p30
      %p37 = scmp.eq.s32.totalorder %s21, 1
      %p38 = por %p36, %p37
      %p39 = scmp.ne.s32.totalorder %s31, %s34
      %p40 = scmp.eq.s32.totalorder %s21, 0
      %p41 = por %p39, %p40
      %p42 = scmp.ne.s32.totalorder %s31, %s34
      %p43 = scmp.eq.s32.totalorder %s26, 1
      %p44 = por %p42, %p43
      %p45 = scmp.ne.s32.totalorder %s34, %s35
      %p46 = scmp.eq.s32.totalorder %s26, 0
      %p47 = por %p45, %p46
      %p48 = scmp.ne.s32.totalorder %s34, %s35
      %p49 = scmp.eq.s32.totalorder %s27, 1
      %p50 = por %p48, %p49
      %p52 = scmp.ne.s32.totalorder %s35, %s51
      %p53 = scmp.eq.s32.totalorder %s27, 0
      %p54 = por %p52, %p53
      %s55 = ssub.s32 %s21, %s28
      %p56 = scmp.eq.s32.totalorder %s55, 0
      %s58 = sadd.s32 %s57, 1
      %s59 = scalar_select %p56, %s57, %s58
      %p62 = pneg %p56
      %p63 = scmp.eq.s32.totalorder %s21, 1
      %p64 = por %p62, %p63
      %p65 = scmp.ne.s32.totalorder %s57, %s60
      %p66 = scmp.eq.s32.totalorder %s21, 0
      %p67 = por %p65, %p66
      %p68 = scmp.ne.s32.totalorder %s57, %s60
      %p69 = scmp.eq.s32.totalorder %s26, 1
      %p70 = por %p68, %p69
      %p71 = scmp.ne.s32.totalorder %s60, %s61
      %p72 = scmp.eq.s32.totalorder %s26, 0
      %p73 = por %p71, %p72
      %p74 = scmp.ne.s32.totalorder %s60, %s61
      %p75 = scmp.eq.s32.totalorder %s27, 1
      %p76 = por %p74, %p75
      %p78 = scmp.ne.s32.totalorder %s61, %s77
      %p79 = scmp.eq.s32.totalorder %s27, 0
      %p80 = por %p78, %p79
      %s82 = sadd.s32 %s81, 1
      %p85 = scmp.eq.s32.totalorder %s21, 1
      %p86 = scmp.ne.s32.totalorder %s81, %s83
      %p87 = scmp.eq.s32.totalorder %s21, 0
      %p88 = por %p86, %p87
      %p89 = scmp.ne.s32.totalorder %s81, %s83
      %p90 = scmp.eq.s32.totalorder %s26, 1
      %p91 = por %p89, %p90
      %p92 = scmp.ne.s32.totalorder %s83, %s84
      %p93 = scmp.eq.s32.totalorder %s26, 0
      %p94 = por %p92, %p93
      %p95 = scmp.ne.s32.totalorder %s83, %s84
      %p96 = scmp.eq.s32.totalorder %s27, 1
      %p97 = por %p95, %p96
      %p99 = scmp.ne.s32.totalorder %s84, %s98
      %p100 = scmp.eq.s32.totalorder %s27, 0
      %p101 = por %p99, %p100
      %s103 = sadd.s32 %s102, 1
      %p106 = scmp.eq.s32.totalorder %s21, 1
      %p107 = scmp.ne.s32.totalorder %s102, %s104
      %p108 = scmp.eq.s32.totalorder %s21, 0
      %p109 = por %p107, %p108
      %p110 = scmp.ne.s32.totalorder %s102, %s104
      %p111 = scmp.eq.s32.totalorder %s26, 1
      %p112 = por %p110, %p111
      %p113 = scmp.ne.s32.totalorder %s104, %s105
      %p114 = scmp.eq.s32.totalorder %s26, 0
      %p115 = por %p113, %p114
      %p116 = scmp.ne.s32.totalorder %s104, %s105
      %p117 = scmp.eq.s32.totalorder %s27, 1
      %p118 = por %p116, %p117
      %p120 = scmp.ne.s32.totalorder %s105, %s119
      %p121 = scmp.eq.s32.totalorder %s27, 0
      %p122 = por %p120, %p121
      %s124 = sadd.s32 %s123, 1
      %p127 = scmp.eq.s32.totalorder %s21, 1
      %p128 = scmp.ne.s32.totalorder %s123, %s125
      %p129 = scmp.eq.s32.totalorder %s21, 0
      %p130 = por %p128, %p129
      %p131 = scmp.ne.s32.totalorder %s123, %s125
      %p132 = scmp.eq.s32.totalorder %s26, 1
      %p133 = por %p131, %p132
      %p134 = scmp.ne.s32.totalorder %s125, %s126
      %p135 = scmp.eq.s32.totalorder %s26, 0
      %p136 = por %p134, %p135
      %p137 = scmp.ne.s32.totalorder %s125, %s126
      %p138 = scmp.eq.s32.totalorder %s27, 1
      %p139 = por %p137, %p138
      %p141 = scmp.ne.s32.totalorder %s126, %s140
      %p142 = scmp.eq.s32.totalorder %s27, 0
      %p143 = por %p141, %p142
      %s145 = sadd.s32 %s144, 1
      %p148 = scmp.eq.s32.totalorder %s21, 1
      %p149 = scmp.ne.s32.totalorder %s144, %s146
      %p150 = scmp.eq.s32.totalorder %s21, 0
      %p151 = por %p149, %p150
      %p152 = scmp.ne.s32.totalorder %s144, %s146
      %p153 = scmp.eq.s32.totalorder %s26, 1
      %p154 = por %p152, %p153
      %p155 = scmp.ne.s32.totalorder %s146, %s147
      %p156 = scmp.eq.s32.totalorder %s26, 0
      %p157 = por %p155, %p156
      %p158 = scmp.ne.s32.totalorder %s146, %s147
      %p159 = scmp.eq.s32.totalorder %s27, 1
      %p160 = por %p158, %p159
      %p162 = scmp.ne.s32.totalorder %s147, %s161
      %p163 = scmp.eq.s32.totalorder %s27, 0
      %p164 = por %p162, %p163
      %s166 = sadd.s32 %s165, 1
      %p169 = scmp.eq.s32.totalorder %s21, 1
      %p170 = scmp.ne.s32.totalorder %s165, %s167
      %p171 = scmp.eq.s32.totalorder %s21, 0
      %p172 = por %p170, %p171
      %p173 = scmp.ne.s32.totalorder %s165, %s167
      %p174 = scmp.eq.s32.totalorder %s26, 1
      %p175 = por %p173, %p174
      %p176 = scmp.ne.s32.totalorder %s167, %s168
      %p177 = scmp.eq.s32.totalorder %s26, 0
      %p178 = por %p176, %p177
      %p179 = scmp.ne.s32.totalorder %s167, %s168
      %p180 = scmp.eq.s32.totalorder %s27, 1
      %p181 = por %p179, %p180
      %p183 = scmp.ne.s32.totalorder %s168, %s182
      %p184 = scmp.eq.s32.totalorder %s27, 0
      %p185 = por %p183, %p184
      %s187 = sadd.s32 %s186, 1
      %p190 = scmp.eq.s32.totalorder %s21, 1
      %p191 = scmp.ne.s32.totalorder %s186, %s188
      %p192 = scmp.eq.s32.totalorder %s21, 0
      %p193 = por %p191, %p192
      %p194 = scmp.ne.s32.totalorder %s186, %s188
      %p195 = scmp.eq.s32.totalorder %s26, 1
      %p196 = por %p194, %p195
      %p197 = scmp.ne.s32.totalorder %s188, %s189
      %p198 = scmp.eq.s32.totalorder %s26, 0
      %p199 = por %p197, %p198
      %p200 = scmp.ne.s32.totalorder %s188, %s189
      %p201 = scmp.eq.s32.totalorder %s27, 1
      %p202 = por %p200, %p201
      %p204 = scmp.ne.s32.totalorder %s189, %s203
      %p205 = scmp.eq.s32.totalorder %s27, 0
      %p206 = por %p204, %p205
      %s207 = ssub.s32 %s21, %s28
      %p208 = scmp.eq.s32.totalorder %s207, 0
      %s210 = sadd.s32 %s209, 1
      %s211 = scalar_select %p208, %s209, %s210
      %p214 = pneg %p208
      %p215 = scmp.eq.s32.totalorder %s21, 1
      %p216 = por %p214, %p215
      %p217 = scmp.ne.s32.totalorder %s209, %s212
      %p218 = scmp.eq.s32.totalorder %s21, 0
      %p219 = por %p217, %p218
      %p220 = scmp.ne.s32.totalorder %s209, %s212
      %p221 = scmp.eq.s32.totalorder %s26, 1
      %p222 = por %p220, %p221
      %p223 = scmp.ne.s32.totalorder %s212, %s213
      %p224 = scmp.eq.s32.totalorder %s26, 0
      %p225 = por %p223, %p224
      %p226 = scmp.ne.s32.totalorder %s212, %s213
      %p227 = scmp.eq.s32.totalorder %s27, 1
      %p228 = por %p226, %p227
      %p230 = scmp.ne.s32.totalorder %s213, %s229
      %p231 = scmp.eq.s32.totalorder %s27, 0
      %p232 = por %p230, %p231
      %p233 = scmp.le.s32.totalorder 1, %s21
      %p234 = scmp.lt.s32.totalorder %s21, 3
      %p235 = pnand %p233, %p234
      %p236 = pneg %p235
      // Predicated region
      $region9: #{tpu_custom_call.1} parent=5 // pred_check
        _
      $region10: #{tpu_custom_call.1} parent=5 // pred_check_branch
        %238 = sbr.rel (%p235) target = $region12
      $region11: #{tpu_custom_call.1} parent=5 // pred_region
        %s239 = ssub.s32 %s21, 1
        // Predicated region
        $region13: #{tpu_custom_call.1} parent=11 // pred_check
          %p240 = pneg %p94
        $region14: #{tpu_custom_call.1} parent=11 // pred_check_branch
          %242 = sbr.rel (%p240) target = $region16
        $region15: #{tpu_custom_call.1} parent=11 // pred_region
          _
        $region16: #{tpu_custom_call.1} parent=11 // pred_fallthru
          _
        // Predicated region
        $region17: #{tpu_custom_call.1} parent=11 // pred_check
          %p243 = pneg %p115
        $region18: #{tpu_custom_call.1} parent=11 // pred_check_branch
          %245 = sbr.rel (%p243) target = $region20
        $region19: #{tpu_custom_call.1} parent=11 // pred_region
          _
        $region20: #{tpu_custom_call.1} parent=11 // pred_fallthru
          _
        // Predicated region
        $region21: #{tpu_custom_call.1} parent=11 // pred_check
          %p246 = pneg %p136
        $region22: #{tpu_custom_call.1} parent=11 // pred_check_branch
          %248 = sbr.rel (%p246) target = $region24
        $region23: #{tpu_custom_call.1} parent=11 // pred_region
          _
        $region24: #{tpu_custom_call.1} parent=11 // pred_fallthru
          _
        // Predicated region
        $region25: #{tpu_custom_call.1} parent=11 // pred_check
          %p249 = pneg %p157
        $region26: #{tpu_custom_call.1} parent=11 // pred_check_branch
          %251 = sbr.rel (%p249) target = $region28
        $region27: #{tpu_custom_call.1} parent=11 // pred_region
          %s253 = ssub.s32 16, 16
          %254 = vsyncadd [#allocation5], %s253
          %s256 = sshll.u32 %s5, 4
          %s257 = int_to_ptr.vmem [resolvable:$true] %s256
          %259 = dma.vmem_to_smem %s257, 16, [#allocation6], [#allocation5]
        $region28: #{tpu_custom_call.1} parent=11 // pred_fallthru
          _
        // Predicated region
        $region29: #{tpu_custom_call.1} parent=11 // pred_check
          %p260 = pneg %p178
        $region30: #{tpu_custom_call.1} parent=11 // pred_check_branch
          %262 = sbr.rel (%p260) target = $region32
        $region31: #{tpu_custom_call.1} parent=11 // pred_region
          _
        $region32: #{tpu_custom_call.1} parent=11 // pred_fallthru
          _
        // Predicated region
        $region33: #{tpu_custom_call.1} parent=11 // pred_check
          %p263 = pneg %p199
        $region34: #{tpu_custom_call.1} parent=11 // pred_check_branch
          %265 = sbr.rel (%p263) target = $region36
        $region35: #{tpu_custom_call.1} parent=11 // pred_region
          _
        $region36: #{tpu_custom_call.1} parent=11 // pred_fallthru
          _
      $region12: #{tpu_custom_call.1} parent=5 // pred_fallthru
        _
      %p266 = scmp.lt.s32.totalorder %s21, 2
      // Predicated region
      $region37: #{tpu_custom_call.1} parent=5 // pred_check
        %p267 = pneg %p266
      $region38: #{tpu_custom_call.1} parent=5 // pred_check_branch
        %269 = sbr.rel (%p267) target = $region40
      $region39: #{tpu_custom_call.1} parent=5 // pred_region
        // Predicated region
        $region41: #{tpu_custom_call.1} parent=39 // pred_check
          %p270 = pneg %p41
        $region42: #{tpu_custom_call.1} parent=39 // pred_check_branch
          %272 = sbr.rel (%p270) target = $region44
        $region43: #{tpu_custom_call.1} parent=39 // pred_region
          %s273 = smul.u32 2, %s21
          %p274 = scmp.lt.s32.totalorder %s273, 3
          %s275 = scalar_select %p274, %s273, 3
          %s276 = smul.addr %s275, 8
          %s277 = smul.addr %s276, 4
          %s278 = scalar_lea.vmem %s0, %s277
          %s279 = smul.u32 2, %s21
        $region44: #{tpu_custom_call.1} parent=39 // pred_fallthru
          _
        // Predicated region
        $region45: #{tpu_custom_call.1} parent=39 // pred_check
          %p280 = pneg %p67
        $region46: #{tpu_custom_call.1} parent=39 // pred_check_branch
          %282 = sbr.rel (%p280) target = $region48
        $region47: #{tpu_custom_call.1} parent=39 // pred_region
          %s283 = sand.u32 %s57, 1
          %s284 = scalar_lea.sflag [#allocation3], %s283
          %s285 = sand.u32 %s57, 1
          %s286 = smul.addr %s285, 128
          %s287 = scalar_lea.vmem [#allocation2], %s286
          %s288 = smul.u32 2, %s21
          %s290 = ssub.s32 2048, 2048
          %291 = vsyncadd %s284, %s290
          %s292 = smul.addr %s288, 8
          %s293 = smul.addr %s292, 128
          %s294 = scalar_lea.hbm %s1, %s293
          %s295 = sshll.u32 %s287, 4
          %s296 = int_to_ptr.vmem [resolvable:$true] %s295
          %301 = dma.hbm_to_vmem [thread:$0]  %s294, 2048, %s296, %s284, 128, 128, 8
        $region48: #{tpu_custom_call.1} parent=39 // pred_fallthru
          _
      $region40: #{tpu_custom_call.1} parent=5 // pred_fallthru
        _
      %p302 = scmp.le.s32.totalorder 1, %s21
      %p303 = scmp.lt.s32.totalorder %s21, 3
      %p304 = pnand %p302, %p303
      %p305 = pneg %p304
      // Predicated region
      $region49: #{tpu_custom_call.1} parent=5 // pred_check
        _
      $region50: #{tpu_custom_call.1} parent=5 // pred_check_branch
        %307 = sbr.rel (%p304) target = $region52
      $region51: #{tpu_custom_call.1} parent=5 // pred_region
        %s308 = ssub.s32 %s21, 1
        %s309 = sand.u32 %s60, 1
        %s310 = scalar_lea.sflag [#allocation3], %s309
        %s311 = sand.u32 %s60, 1
        %s312 = smul.addr %s311, 128
        %s313 = scalar_lea.vmem [#allocation2], %s312
        // Predicated region
        $region53: #{tpu_custom_call.1} parent=51 // pred_check
          %p314 = pneg %p73
        $region54: #{tpu_custom_call.1} parent=51 // pred_check_branch
          %316 = sbr.rel (%p314) target = $region56
        $region55: #{tpu_custom_call.1} parent=51 // pred_region
          %317 = dma.done %s310, 2048
        $region56: #{tpu_custom_call.1} parent=51 // pred_fallthru
          _
        // Predicated region
        $region57: #{tpu_custom_call.1} parent=51 // pred_check
          %p318 = pneg %p157
        $region58: #{tpu_custom_call.1} parent=51 // pred_check_branch
          %320 = sbr.rel (%p318) target = $region60
        $region59: #{tpu_custom_call.1} parent=51 // pred_region
          %321 = dma.done [#allocation5], 16
        $region60: #{tpu_custom_call.1} parent=51 // pred_fallthru
          _
        %322 = sfence
        %s323 = smul.u32 2, %s26
        %p324 = scmp.lt.s32.totalorder %s323, 3
        %s325 = scalar_select %p324, %s323, 3
        %s326 = smul.addr %s325, 8
        %s327 = smul.addr %s326, 4
        %s328 = scalar_lea.vmem %s0, %s327
        %p329 = pneg %p47
        %p330 = pneg %p44
        %s331 = sand.u32 %s60, 1
        %s332 = scalar_lea.sflag [#allocation3], %s331
        %s333 = sand.u32 %s60, 1
        %s334 = smul.addr %s333, 128
        %s335 = scalar_lea.vmem [#allocation2], %s334
        %p336 = pneg %p73
        %p337 = pneg %p70
        %p338 = pneg %p94
        %p339 = pneg %p91
        %p340 = pneg %p115
        %p341 = pneg %p112
        %p342 = pneg %p136
        %p343 = pneg %p133
        %p344 = pneg %p157
        %p345 = pneg %p154
        %p346 = pneg %p178
        %p347 = pneg %p175
        %p348 = pneg %p199
        %p349 = pneg %p196
        %p350 = pneg %p225
        %p351 = pneg %p222
        %s352 = sand.u32 %s212, 1
        %s353 = scalar_lea.sflag [#allocation4], %s352
        %s354 = sand.u32 %s212, 1
        %s355 = smul.addr %s354, 128
        %s356 = scalar_lea.vmem [#allocation7], %s355
        %s357 = smul.u32 2, %s26
        %p358 = scmp.lt.s32.totalorder %s357, 3
        %s359 = scalar_select %p358, %s357, 3
        %s360 = smul.addr %s359, 8
        %s361 = smul.addr %s360, 4
        %s362 = scalar_lea.vmem %s0, %s361
        %s363 = smul.u32 2, %s26
        %s364 = smul.u32 2, %s26
        %s365 = smul.u32 2, %s26
        %v367 = vld [vmem:[%s362] sm:$0xf]
        %v368 = vld [vmem:[%s362 + $0x4] sm:$0xf]
        %v369 = vld [vmem:[%s362 + $0x8] sm:$0xf]
        %v370 = vld [vmem:[%s362 + $0xc] sm:$0xf]
        %v371 = vld [vmem:[%s362 + $0x10] sm:$0xf]
        %v372 = vld [vmem:[%s362 + $0x14] sm:$0xf]
        %v373 = vld [vmem:[%s362 + $0x18] sm:$0xf]
        %v374 = vld [vmem:[%s362 + $0x1c] sm:$0xf]
        %v375 = vld [vmem:[%s362 + $0x20] sm:$0xf]
        %v376 = vld [vmem:[%s362 + $0x24] sm:$0xf]
        %v377 = vld [vmem:[%s362 + $0x28] sm:$0xf]
        %v378 = vld [vmem:[%s362 + $0x2c] sm:$0xf]
        %v379 = vld [vmem:[%s362 + $0x30] sm:$0xf]
        %v380 = vld [vmem:[%s362 + $0x34] sm:$0xf]
        %v381 = vld [vmem:[%s362 + $0x38] sm:$0xf]
        %v382 = vld [vmem:[%s362 + $0x3c] sm:$0xf]
        %v383 = vld [vmem:[%s2] sm:$0xf]
        %v384 = vld [vmem:[%s2 + $0x4] sm:$0xf]
        %v385 = vld [vmem:[%s3] sm:$0x1]
        %v387 = vlaneseq
        %v388 = vshrl.u32 %v387, 7
        %v389 = vsub.s32 0, %v388
        %v390 = vrot.slane %v385, %v389
        %v408 = vunpack.c.l.b16 %v367
        %v409 = vunpack.c.l.b16 %v368
        %v410 = vunpack.c.l.b16 %v369
        %v411 = vunpack.c.l.b16 %v370
        %v412 = vunpack.c.l.b16 %v371
        %v413 = vunpack.c.l.b16 %v372
        %v414 = vunpack.c.l.b16 %v373
        %v415 = vunpack.c.l.b16 %v374
        %v416 = vunpack.c.l.b16 %v375
        %v417 = vunpack.c.l.b16 %v376
        %v418 = vunpack.c.l.b16 %v377
        %v419 = vunpack.c.l.b16 %v378
        %v420 = vunpack.c.l.b16 %v379
        %v421 = vunpack.c.l.b16 %v380
        %v422 = vunpack.c.l.b16 %v381
        %v423 = vunpack.c.l.b16 %v382
        %v424 = vpack.c.b16 %v409, %v408
        %v425 = vpack.c.b16 %v411, %v410
        %v426 = vpack.c.b16 %v413, %v412
        %v427 = vpack.c.b16 %v415, %v414
        %v428 = vpack.c.b16 %v417, %v416
        %v429 = vpack.c.b16 %v419, %v418
        %v430 = vpack.c.b16 %v421, %v420
        %v431 = vpack.c.b16 %v423, %v422
        %v434 = vunpack.c.l.b16 %v383
        %v435 = vunpack.c.l.b16 %v384
        %v436 = vpack.c.b16 %v435, %v434
        %vm438 = vcmask 130048
        %v440 = vsel %vm438, %v424, 0
        %v443 = vsel %vm438, %v425, 0
        %v446 = vsel %vm438, %v426, 0
        %v449 = vsel %vm438, %v427, 0
        %v452 = vsel %vm438, %v428, 0
        %v455 = vsel %vm438, %v429, 0
        %v458 = vsel %vm438, %v430, 0
        %v461 = vsel %vm438, %v431, 0
        %463 = vmatprep.subr.bf16.mxu0 0
        %464 = vmatpush1.bf16.msra.mxu0 %v436
        %465 = vmatprep.subr.bf16.mxu0 0
        %466 = vmatpush1.bf16.msra.mxu0 0
        %467 = vmatprep.subr.bf16.mxu0 0
        %468 = vmatpush1.bf16.msra.mxu0 0
        %469 = vmatprep.subr.bf16.mxu0 0
        %470 = vmatpush1.bf16.msra.mxu0 0
        %471 = vmatprep.subr.bf16.mxu0 0
        %472 = vmatpush1.bf16.msra.mxu0 0
        %473 = vmatprep.subr.bf16.mxu0 0
        %474 = vmatpush1.bf16.msra.mxu0 0
        %475 = vmatprep.subr.bf16.mxu0 0
        %476 = vmatpush1.bf16.msra.mxu0 0
        %477 = vmatprep.subr.bf16.mxu0 0
        %478 = vmatpush1.bf16.msra.mxu0 0
        %479 = vmatprep.subr.bf16.mxu0 0
        %480 = vmatpush1.bf16.msra.mxu0 0
        %481 = vmatprep.subr.bf16.mxu0 0
        %482 = vmatpush1.bf16.msra.mxu0 0
        %483 = vmatprep.subr.bf16.mxu0 0
        %484 = vmatpush1.bf16.msra.mxu0 0
        %485 = vmatprep.subr.bf16.mxu0 0
        %486 = vmatpush1.bf16.msra.mxu0 0
        %487 = vmatprep.subr.bf16.mxu0 0
        %488 = vmatpush1.bf16.msra.mxu0 0
        %489 = vmatprep.subr.bf16.mxu0 0
        %490 = vmatpush1.bf16.msra.mxu0 0
        %491 = vmatprep.subr.bf16.mxu0 0
        %492 = vmatpush1.bf16.msra.mxu0 0
        %493 = vmatprep.subr.bf16.mxu0 0
        %494 = vmatpush1.bf16.msra.mxu0 0
        %495 = vmatprep.mubr.bf16.mxu0 0
        %496 = vmatmul.mubr.bf16.gmra.mrb[0].mxu0 %v440
        %v497 = vpop.f32.mrb[0].mxu0
        %v498 = vadd.f32 %v390, %v497
        %v499 = vpop.f32.mrb[0].mxu0
        %v500 = vpop.f32.mrb[0].mxu0
        %v501 = vadd.f32 %v390, %v500
        %v502 = vpop.f32.mrb[0].mxu0
        %503 = vmatprep.mubr.bf16.mxu0 0
        %504 = vmatmul.mubr.bf16.gmra.mrb[0].mxu0 %v443
        %v505 = vpop.f32.mrb[0].mxu0
        %v506 = vadd.f32 %v390, %v505
        %v507 = vpop.f32.mrb[0].mxu0
        %v508 = vpop.f32.mrb[0].mxu0
        %v509 = vadd.f32 %v390, %v508
        %v510 = vpop.f32.mrb[0].mxu0
        %511 = vmatprep.mubr.bf16.mxu0 0
        %512 = vmatmul.mubr.bf16.gmra.mrb[0].mxu0 %v446
        %v513 = vpop.f32.mrb[0].mxu0
        %v514 = vadd.f32 %v390, %v513
        %v515 = vpop.f32.mrb[0].mxu0
        %v516 = vpop.f32.mrb[0].mxu0
        %v517 = vadd.f32 %v390, %v516
        %v518 = vpop.f32.mrb[0].mxu0
        %519 = vmatprep.mubr.bf16.mxu0 0
        %520 = vmatmul.mubr.bf16.gmra.mrb[0].mxu0 %v449
        %v521 = vpop.f32.mrb[0].mxu0
        %v522 = vadd.f32 %v390, %v521
        %v523 = vpop.f32.mrb[0].mxu0
        %v524 = vpop.f32.mrb[0].mxu0
        %v525 = vadd.f32 %v390, %v524
        %v526 = vpop.f32.mrb[0].mxu0
        %527 = vmatprep.mubr.bf16.mxu0 0
        %528 = vmatmul.mubr.bf16.gmra.mrb[0].mxu0 %v452
        %v529 = vpop.f32.mrb[0].mxu0
        %v530 = vadd.f32 %v390, %v529
        %v531 = vpop.f32.mrb[0].mxu0
        %v532 = vpop.f32.mrb[0].mxu0
        %v533 = vadd.f32 %v390, %v532
        %v534 = vpop.f32.mrb[0].mxu0
        %535 = vmatprep.mubr.bf16.mxu0 0
        %536 = vmatmul.mubr.bf16.gmra.mrb[0].mxu0 %v455
        %v537 = vpop.f32.mrb[0].mxu0
        %v538 = vadd.f32 %v390, %v537
        %v539 = vpop.f32.mrb[0].mxu0
        %v540 = vpop.f32.mrb[0].mxu0
        %v541 = vadd.f32 %v390, %v540
        %v542 = vpop.f32.mrb[0].mxu0
        %543 = vmatprep.mubr.bf16.mxu0 0
        %544 = vmatmul.mubr.bf16.gmra.mrb[0].mxu0 %v458
        %v545 = vpop.f32.mrb[0].mxu0
        %v546 = vadd.f32 %v390, %v545
        %v547 = vpop.f32.mrb[0].mxu0
        %v548 = vpop.f32.mrb[0].mxu0
        %v549 = vadd.f32 %v390, %v548
        %v550 = vpop.f32.mrb[0].mxu0
        %551 = vmatprep.mubr.bf16.mxu0 0
        %552 = vmatmul.mubr.bf16.gmra.mrb[0].mxu0 %v461
        %v553 = vpop.f32.mrb[0].mxu0
        %v554 = vadd.f32 %v390, %v553
        %v555 = vpop.f32.mrb[0].mxu0
        %v556 = vpop.f32.mrb[0].mxu0
        %v557 = vadd.f32 %v390, %v556
        %v558 = vpop.f32.mrb[0].mxu0
        %559 = vdwg.mxu0
        %v560 = vmax.f32 %v498, 0.0
        %v561 = vmax.f32 %v501, 0.0
        %v562 = vmax.f32 %v506, 0.0
        %v563 = vmax.f32 %v509, 0.0
        %v564 = vmax.f32 %v514, 0.0
        %v565 = vmax.f32 %v517, 0.0
        %v566 = vmax.f32 %v522, 0.0
        %v567 = vmax.f32 %v525, 0.0
        %v568 = vmax.f32 %v530, 0.0
        %v569 = vmax.f32 %v533, 0.0
        %v570 = vmax.f32 %v538, 0.0
        %v571 = vmax.f32 %v541, 0.0
        %v572 = vmax.f32 %v546, 0.0
        %v573 = vmax.f32 %v549, 0.0
        %v574 = vmax.f32 %v554, 0.0
        %v575 = vmax.f32 %v557, 0.0
        %v576 = vmul.f32 %v560, 0.3
        %v577 = vmul.f32 %v561, 0.3
        %v578 = vmul.f32 %v562, 0.3
        %v579 = vmul.f32 %v563, 0.3
        %v580 = vmul.f32 %v564, 0.3
        %v581 = vmul.f32 %v565, 0.3
        %v582 = vmul.f32 %v566, 0.3
        %v583 = vmul.f32 %v567, 0.3
        %v584 = vmul.f32 %v568, 0.3
        %v585 = vmul.f32 %v569, 0.3
        %v586 = vmul.f32 %v570, 0.3
        %v587 = vmul.f32 %v571, 0.3
        %v588 = vmul.f32 %v572, 0.3
        %v589 = vmul.f32 %v573, 0.3
        %v590 = vmul.f32 %v574, 0.3
        %v591 = vmul.f32 %v575, 0.3
        %v592 = vld [vmem:[%s313] sm:$0xff]
        %v593 = vld [vmem:[%s313 + $0x8] sm:$0xff]
        %v594 = vld [vmem:[%s313 + $0x10] sm:$0xff]
        %v595 = vld [vmem:[%s313 + $0x18] sm:$0xff]
        %v596 = vld [vmem:[%s313 + $0x20] sm:$0xff]
        %v597 = vld [vmem:[%s313 + $0x28] sm:$0xff]
        %v598 = vld [vmem:[%s313 + $0x30] sm:$0xff]
        %v599 = vld [vmem:[%s313 + $0x38] sm:$0xff]
        %v600 = vld [vmem:[%s313 + $0x40] sm:$0xff]
        %v601 = vld [vmem:[%s313 + $0x48] sm:$0xff]
        %v602 = vld [vmem:[%s313 + $0x50] sm:$0xff]
        %v603 = vld [vmem:[%s313 + $0x58] sm:$0xff]
        %v604 = vld [vmem:[%s313 + $0x60] sm:$0xff]
        %v605 = vld [vmem:[%s313 + $0x68] sm:$0xff]
        %v606 = vld [vmem:[%s313 + $0x70] sm:$0xff]
        %v607 = vld [vmem:[%s313 + $0x78] sm:$0xff]
        %v608 = vpack.c.bf16 %v561, %v560
        %v609 = vpack.c.bf16 %v563, %v562
        %v610 = vpack.c.bf16 %v565, %v564
        %v611 = vpack.c.bf16 %v567, %v566
        %v612 = vpack.c.bf16 %v569, %v568
        %v613 = vpack.c.bf16 %v571, %v570
        %v614 = vpack.c.bf16 %v573, %v572
        %v615 = vpack.c.bf16 %v575, %v574
        %v616 = vld [vmem:[%s4] sm:$0xf]
        %v617 = vld [vmem:[%s4 + $0x4] sm:$0xf]
        %v618 = vld [vmem:[%s4 + $0x8] sm:$0xf]
        %v619 = vld [vmem:[%s4 + $0xc] sm:$0xf]
        %v624 = vunpack.c.l.b16 %v616
        %v625 = vunpack.c.l.b16 %v617
        %v626 = vunpack.c.l.b16 %v618
        %v627 = vunpack.c.l.b16 %v619
        %v628 = vpack.c.b16 %v625, %v624
        %v629 = vpack.c.b16 %v627, %v626
        %vm632 = vcmask 261120
        %v634 = vsel %vm632, %v608, 0
        %v637 = vsel %vm632, %v609, 0
        %v640 = vsel %vm632, %v610, 0
        %v643 = vsel %vm632, %v611, 0
        %v646 = vsel %vm632, %v612, 0
        %v649 = vsel %vm632, %v613, 0
        %v652 = vsel %vm632, %v614, 0
        %v655 = vsel %vm632, %v615, 0
        %657 = vmatprep.subr.bf16.mxu0 0
        %658 = vmatpush1.bf16.msra.mxu0 %v628
        %659 = vmatprep.subr.bf16.mxu0 0
        %660 = vmatpush1.bf16.msra.mxu0 %v629
        %661 = vmatprep.subr.bf16.mxu0 0
        %662 = vmatpush1.bf16.msra.mxu0 0
        %663 = vmatprep.subr.bf16.mxu0 0
        %664 = vmatpush1.bf16.msra.mxu0 0
        %665 = vmatprep.subr.bf16.mxu0 0
        %666 = vmatpush1.bf16.msra.mxu0 0
        %667 = vmatprep.subr.bf16.mxu0 0
        %668 = vmatpush1.bf16.msra.mxu0 0
        %669 = vmatprep.subr.bf16.mxu0 0
        %670 = vmatpush1.bf16.msra.mxu0 0
        %671 = vmatprep.subr.bf16.mxu0 0
        %672 = vmatpush1.bf16.msra.mxu0 0
        %673 = vmatprep.subr.bf16.mxu0 0
        %674 = vmatpush1.bf16.msra.mxu0 0
        %675 = vmatprep.subr.bf16.mxu0 0
        %676 = vmatpush1.bf16.msra.mxu0 0
        %677 = vmatprep.subr.bf16.mxu0 0
        %678 = vmatpush1.bf16.msra.mxu0 0
        %679 = vmatprep.subr.bf16.mxu0 0
        %680 = vmatpush1.bf16.msra.mxu0 0
        %681 = vmatprep.subr.bf16.mxu0 0
        %682 = vmatpush1.bf16.msra.mxu0 0
        %683 = vmatprep.subr.bf16.mxu0 0
        %684 = vmatpush1.bf16.msra.mxu0 0
        %685 = vmatprep.subr.bf16.mxu0 0
        %686 = vmatpush1.bf16.msra.mxu0 0
        %687 = vmatprep.subr.bf16.mxu0 0
        %688 = vmatpush1.bf16.msra.mxu0 0
        %689 = vmatprep.mubr.bf16.mxu0 0
        %690 = vmatmul.mubr.bf16.gmra.mrb[0].mxu0 %v634
        %v691 = vpop.f32.mrb[0].mxu0
        %v692 = vadd.f32 0.0, %v691
        %v693 = vpop.f32.mrb[0].mxu0
        %v694 = vpop.f32.mrb[0].mxu0
        %v695 = vadd.f32 0.0, %v694
        %v696 = vpop.f32.mrb[0].mxu0
        %697 = vmatprep.mubr.bf16.mxu0 0
        %698 = vmatmul.mubr.bf16.gmra.mrb[0].mxu0 %v637
        %v699 = vpop.f32.mrb[0].mxu0
        %v700 = vadd.f32 0.0, %v699
        %v701 = vpop.f32.mrb[0].mxu0
        %v702 = vpop.f32.mrb[0].mxu0
        %v703 = vadd.f32 0.0, %v702
        %v704 = vpop.f32.mrb[0].mxu0
        %705 = vmatprep.mubr.bf16.mxu0 0
        %706 = vmatmul.mubr.bf16.gmra.mrb[0].mxu0 %v640
        %v707 = vpop.f32.mrb[0].mxu0
        %v708 = vadd.f32 0.0, %v707
        %v709 = vpop.f32.mrb[0].mxu0
        %v710 = vpop.f32.mrb[0].mxu0
        %v711 = vadd.f32 0.0, %v710
        %v712 = vpop.f32.mrb[0].mxu0
        %713 = vmatprep.mubr.bf16.mxu0 0
        %714 = vmatmul.mubr.bf16.gmra.mrb[0].mxu0 %v643
        %v715 = vpop.f32.mrb[0].mxu0
        %v716 = vadd.f32 0.0, %v715
        %v717 = vpop.f32.mrb[0].mxu0
        %v718 = vpop.f32.mrb[0].mxu0
        %v719 = vadd.f32 0.0, %v718
        %v720 = vpop.f32.mrb[0].mxu0
        %721 = vmatprep.mubr.bf16.mxu0 0
        %722 = vmatmul.mubr.bf16.gmra.mrb[0].mxu0 %v646
        %v723 = vpop.f32.mrb[0].mxu0
        %v724 = vadd.f32 0.0, %v723
        %v725 = vpop.f32.mrb[0].mxu0
        %v726 = vpop.f32.mrb[0].mxu0
        %v727 = vadd.f32 0.0, %v726
        %v728 = vpop.f32.mrb[0].mxu0
        %729 = vmatprep.mubr.bf16.mxu0 0
        %730 = vmatmul.mubr.bf16.gmra.mrb[0].mxu0 %v649
        %v731 = vpop.f32.mrb[0].mxu0
        %v732 = vadd.f32 0.0, %v731
        %v733 = vpop.f32.mrb[0].mxu0
        %v734 = vpop.f32.mrb[0].mxu0
        %v735 = vadd.f32 0.0, %v734
        %v736 = vpop.f32.mrb[0].mxu0
        %737 = vmatprep.mubr.bf16.mxu0 0
        %738 = vmatmul.mubr.bf16.gmra.mrb[0].mxu0 %v652
        %v739 = vpop.f32.mrb[0].mxu0
        %v740 = vadd.f32 0.0, %v739
        %v741 = vpop.f32.mrb[0].mxu0
        %v742 = vpop.f32.mrb[0].mxu0
        %v743 = vadd.f32 0.0, %v742
        %v744 = vpop.f32.mrb[0].mxu0
        %745 = vmatprep.mubr.bf16.mxu0 0
        %746 = vmatmul.mubr.bf16.gmra.mrb[0].mxu0 %v655
        %v747 = vpop.f32.mrb[0].mxu0
        %v748 = vadd.f32 0.0, %v747
        %v749 = vpop.f32.mrb[0].mxu0
        %v750 = vpop.f32.mrb[0].mxu0
        %v751 = vadd.f32 0.0, %v750
        %v752 = vpop.f32.mrb[0].mxu0
        %753 = vdwg.mxu0
        %s754 = sld [smem:[#allocation6]]
        %v755 = vstv %s754
        %v756 = vadd.f32 %v692, %v755
        %v757 = vadd.f32 %v695, %v755
        %v758 = vadd.f32 %v700, %v755
        %v759 = vadd.f32 %v703, %v755
        %v760 = vadd.f32 %v708, %v755
        %v761 = vadd.f32 %v711, %v755
        %v762 = vadd.f32 %v716, %v755
        %v763 = vadd.f32 %v719, %v755
        %772 = vrot.lane.b32.xlu0 %v692, 127
        %v773 = vpop.permute.xlu0 %772
        %774 = vrot.lane.b32.xlu0 %v695, 127
        %v775 = vpop.permute.xlu0 %774
        %776 = vrot.lane.b32.xlu0 %v700, 127
        %v777 = vpop.permute.xlu0 %776
        %778 = vrot.lane.b32.xlu0 %v703, 127
        %v779 = vpop.permute.xlu0 %778
        %780 = vrot.lane.b32.xlu0 %v708, 127
        %v781 = vpop.permute.xlu0 %780
        %782 = vrot.lane.b32.xlu0 %v711, 127
        %v783 = vpop.permute.xlu0 %782
        %784 = vrot.lane.b32.xlu0 %v716, 127
        %v785 = vpop.permute.xlu0 %784
        %786 = vrot.lane.b32.xlu0 %v719, 127
        %v787 = vpop.permute.xlu0 %786
        %796 = vxpose.xlu0.b32.start [1/16] %v773, 128
        %797 = vxpose.xlu0.b32.cont [2/16] %v775, 128
        %798 = vxpose.xlu0.b32.cont [3/16] %v777, 128
        %799 = vxpose.xlu0.b32.cont [4/16] %v779, 128
        %800 = vxpose.xlu0.b32.cont [5/16] %v781, 128
        %801 = vxpose.xlu0.b32.cont [6/16] %v783, 128
        %802 = vxpose.xlu0.b32.cont [7/16] %v785, 128
        %803 = vxpose.xlu0.b32.cont [8/16] %v787, 128
        %804 = vxpose.xlu0.b32.cont [9/16] 0.0, 128
        %805 = vxpose.xlu0.b32.cont [10/16] 0.0, 128
        %806 = vxpose.xlu0.b32.cont [11/16] 0.0, 128
        %807 = vxpose.xlu0.b32.cont [12/16] 0.0, 128
        %808 = vxpose.xlu0.b32.cont [13/16] 0.0, 128
        %809 = vxpose.xlu0.b32.cont [14/16] 0.0, 128
        %810 = vxpose.xlu0.b32.cont [15/16] 0.0, 128
        %811 = vxpose.xlu0.b32.end [16/16] 0.0, 128
        %v812 = vpop.trf.xlu0
        %v813 = vpop.trf.xlu0
        %v814 = vpop.trf.xlu0
        %v815 = vpop.trf.xlu0
        %v816 = vpop.trf.xlu0
        %v817 = vpop.trf.xlu0
        %v818 = vpop.trf.xlu0
        %v819 = vpop.trf.xlu0
        %v820 = vpop.trf.xlu0
        %v821 = vpop.trf.xlu0
        %v822 = vpop.trf.xlu0
        %v823 = vpop.trf.xlu0
        %v824 = vpop.trf.xlu0
        %v825 = vpop.trf.xlu0
        %v826 = vpop.trf.xlu0
        %v827 = vpop.trf.xlu0
        %829 = vset.pattern.permute.xlu0 0
        %830 = vperm.xlu0 %829, %v756
        %v831 = vpop.permute.xlu0 %830
        %834 = vset.pattern.permute.xlu0 0
        %835 = vperm.xlu0 %834, %v757
        %v836 = vpop.permute.xlu0 %835
        %839 = vset.pattern.permute.xlu0 0
        %840 = vperm.xlu0 %839, %v758
        %v841 = vpop.permute.xlu0 %840
        %844 = vset.pattern.permute.xlu0 0
        %845 = vperm.xlu0 %844, %v759
        %v846 = vpop.permute.xlu0 %845
        %849 = vset.pattern.permute.xlu0 0
        %850 = vperm.xlu0 %849, %v760
        %v851 = vpop.permute.xlu0 %850
        %854 = vset.pattern.permute.xlu0 0
        %855 = vperm.xlu0 %854, %v761
        %v856 = vpop.permute.xlu0 %855
        %859 = vset.pattern.permute.xlu0 0
        %860 = vperm.xlu0 %859, %v762
        %v861 = vpop.permute.xlu0 %860
        %864 = vset.pattern.permute.xlu0 0
        %865 = vperm.xlu0 %864, %v763
        %v866 = vpop.permute.xlu0 %865
        %v868 = vlaneseq
        %v869 = vshrl.u32 %v868, 7
        %v870 = vsub.s32 0, %v869
        %v871 = vrot.slane %v812, %v870
        %v872 = vadd.f32 %v831, %v871
        %v873 = vadd.f32 %v836, %v871
        %v874 = vadd.f32 %v841, %v871
        %v875 = vadd.f32 %v846, %v871
        %v876 = vadd.f32 %v851, %v871
        %v877 = vadd.f32 %v856, %v871
        %v878 = vadd.f32 %v861, %v871
        %v879 = vadd.f32 %v866, %v871
        %v880 = vtanh.pop %v872
        %v881 = vtanh.pop %v873
        %v882 = vtanh.pop %v874
        %v883 = vtanh.pop %v875
        %v884 = vtanh.pop %v876
        %v885 = vtanh.pop %v877
        %v886 = vtanh.pop %v878
        %v887 = vtanh.pop %v879
        %v888 = vmul.f32 %v880, %v592
        %v889 = vmul.f32 %v881, %v593
        %v890 = vmul.f32 %v882, %v594
        %v891 = vmul.f32 %v883, %v595
        %v892 = vmul.f32 %v884, %v596
        %v893 = vmul.f32 %v885, %v597
        %v894 = vmul.f32 %v886, %v598
        %v895 = vmul.f32 %v887, %v599
        %v896 = vpack.c.bf16 %v889, %v888
        %v897 = vpack.c.bf16 %v891, %v890
        %v898 = vpack.c.bf16 %v893, %v892
        %v899 = vpack.c.bf16 %v895, %v894
        %vm900 = vcmask 523264
        %v902 = vsel %vm900, %v896, 0
        %v905 = vsel %vm900, %v897, 0
        %v908 = vsel %vm900, %v898, 0
        %v911 = vsel %vm900, %v899, 0
        %913 = vmatprep.subr.bf16.mxu0 0
        %914 = vmatpush1.bf16.msra.mxu0 %v608
        %915 = vmatprep.subr.bf16.mxu0 0
        %916 = vmatpush1.bf16.msra.mxu0 %v609
        %917 = vmatprep.subr.bf16.mxu0 0
        %918 = vmatpush1.bf16.msra.mxu0 %v610
        %919 = vmatprep.subr.bf16.mxu0 0
        %920 = vmatpush1.bf16.msra.mxu0 %v611
        %921 = vmatprep.subr.bf16.mxu0 0
        %922 = vmatpush1.bf16.msra.mxu0 0
        %923 = vmatprep.subr.bf16.mxu0 0
        %924 = vmatpush1.bf16.msra.mxu0 0
        %925 = vmatprep.subr.bf16.mxu0 0
        %926 = vmatpush1.bf16.msra.mxu0 0
        %927 = vmatprep.subr.bf16.mxu0 0
        %928 = vmatpush1.bf16.msra.mxu0 0
        %929 = vmatprep.subr.bf16.mxu0 0
        %930 = vmatpush1.bf16.msra.mxu0 0
        %931 = vmatprep.subr.bf16.mxu0 0
        %932 = vmatpush1.bf16.msra.mxu0 0
        %933 = vmatprep.subr.bf16.mxu0 0
        %934 = vmatpush1.bf16.msra.mxu0 0
        %935 = vmatprep.subr.bf16.mxu0 0
        %936 = vmatpush1.bf16.msra.mxu0 0
        %937 = vmatprep.subr.bf16.mxu0 0
        %938 = vmatpush1.bf16.msra.mxu0 0
        %939 = vmatprep.subr.bf16.mxu0 0
        %940 = vmatpush1.bf16.msra.mxu0 0
        %941 = vmatprep.subr.bf16.mxu0 0
        %942 = vmatpush1.bf16.msra.mxu0 0
        %943 = vmatprep.subr.bf16.mxu0 0
        %944 = vmatpush1.bf16.msra.mxu0 0
        %945 = vmatprep.mubr.bf16.mxu0 0
        %946 = vmatmul.mubr.bf16.gmra.mrb[0].mxu0 %v902
        %v947 = vpop.f32.mrb[0].mxu0
        %v948 = vadd.f32 0.0, %v947
        %v949 = vpop.f32.mrb[0].mxu0
        %v950 = vpop.f32.mrb[0].mxu0
        %v951 = vadd.f32 0.0, %v950
        %v952 = vpop.f32.mrb[0].mxu0
        %953 = vmatprep.mubr.bf16.mxu0 0
        %954 = vmatmul.mubr.bf16.gmra.mrb[0].mxu0 %v905
        %v955 = vpop.f32.mrb[0].mxu0
        %v956 = vadd.f32 0.0, %v955
        %v957 = vpop.f32.mrb[0].mxu0
        %v958 = vpop.f32.mrb[0].mxu0
        %v959 = vadd.f32 0.0, %v958
        %v960 = vpop.f32.mrb[0].mxu0
        %961 = vmatprep.mubr.bf16.mxu0 0
        %962 = vmatmul.mubr.bf16.gmra.mrb[0].mxu0 %v908
        %v963 = vpop.f32.mrb[0].mxu0
        %v964 = vadd.f32 0.0, %v963
        %v965 = vpop.f32.mrb[0].mxu0
        %v966 = vpop.f32.mrb[0].mxu0
        %v967 = vadd.f32 0.0, %v966
        %v968 = vpop.f32.mrb[0].mxu0
        %969 = vmatprep.mubr.bf16.mxu0 0
        %970 = vmatmul.mubr.bf16.gmra.mrb[0].mxu0 %v911
        %v971 = vpop.f32.mrb[0].mxu0
        %v972 = vadd.f32 0.0, %v971
        %v973 = vpop.f32.mrb[0].mxu0
        %v974 = vpop.f32.mrb[0].mxu0
        %v975 = vadd.f32 0.0, %v974
        %v976 = vpop.f32.mrb[0].mxu0
        %977 = vdwg.mxu0
        %v978 = vadd.f32 %v724, %v755
        %v979 = vadd.f32 %v727, %v755
        %v980 = vadd.f32 %v732, %v755
        %v981 = vadd.f32 %v735, %v755
        %v982 = vadd.f32 %v740, %v755
        %v983 = vadd.f32 %v743, %v755
        %v984 = vadd.f32 %v748, %v755
        %v985 = vadd.f32 %v751, %v755
        %994 = vrot.lane.b32.xlu0 %v724, 127
        %v995 = vpop.permute.xlu0 %994
        %996 = vrot.lane.b32.xlu0 %v727, 127
        %v997 = vpop.permute.xlu0 %996
        %998 = vrot.lane.b32.xlu0 %v732, 127
        %v999 = vpop.permute.xlu0 %998
        %1000 = vrot.lane.b32.xlu0 %v735, 127
        %v1001 = vpop.permute.xlu0 %1000
        %1002 = vrot.lane.b32.xlu0 %v740, 127
        %v1003 = vpop.permute.xlu0 %1002
        %1004 = vrot.lane.b32.xlu0 %v743, 127
        %v1005 = vpop.permute.xlu0 %1004
        %1006 = vrot.lane.b32.xlu0 %v748, 127
        %v1007 = vpop.permute.xlu0 %1006
        %1008 = vrot.lane.b32.xlu0 %v751, 127
        %v1009 = vpop.permute.xlu0 %1008
        %1018 = vxpose.xlu0.b32.start [1/16] %v995, 128
        %1019 = vxpose.xlu0.b32.cont [2/16] %v997, 128
        %1020 = vxpose.xlu0.b32.cont [3/16] %v999, 128
        %1021 = vxpose.xlu0.b32.cont [4/16] %v1001, 128
        %1022 = vxpose.xlu0.b32.cont [5/16] %v1003, 128
        %1023 = vxpose.xlu0.b32.cont [6/16] %v1005, 128
        %1024 = vxpose.xlu0.b32.cont [7/16] %v1007, 128
        %1025 = vxpose.xlu0.b32.cont [8/16] %v1009, 128
        %1026 = vxpose.xlu0.b32.cont [9/16] 0.0, 128
        %1027 = vxpose.xlu0.b32.cont [10/16] 0.0, 128
        %1028 = vxpose.xlu0.b32.cont [11/16] 0.0, 128
        %1029 = vxpose.xlu0.b32.cont [12/16] 0.0, 128
        %1030 = vxpose.xlu0.b32.cont [13/16] 0.0, 128
        %1031 = vxpose.xlu0.b32.cont [14/16] 0.0, 128
        %1032 = vxpose.xlu0.b32.cont [15/16] 0.0, 128
        %1033 = vxpose.xlu0.b32.end [16/16] 0.0, 128
        %v1034 = vpop.trf.xlu0
        %v1035 = vpop.trf.xlu0
        %v1036 = vpop.trf.xlu0
        %v1037 = vpop.trf.xlu0
        %v1038 = vpop.trf.xlu0
        %v1039 = vpop.trf.xlu0
        %v1040 = vpop.trf.xlu0
        %v1041 = vpop.trf.xlu0
        %v1042 = vpop.trf.xlu0
        %v1043 = vpop.trf.xlu0
        %v1044 = vpop.trf.xlu0
        %v1045 = vpop.trf.xlu0
        %v1046 = vpop.trf.xlu0
        %v1047 = vpop.trf.xlu0
        %v1048 = vpop.trf.xlu0
        %v1049 = vpop.trf.xlu0
        %1051 = vset.pattern.permute.xlu0 0
        %1052 = vperm.xlu0 %1051, %v978
        %v1053 = vpop.permute.xlu0 %1052
        %1056 = vset.pattern.permute.xlu0 0
        %1057 = vperm.xlu0 %1056, %v979
        %v1058 = vpop.permute.xlu0 %1057
        %1061 = vset.pattern.permute.xlu0 0
        %1062 = vperm.xlu0 %1061, %v980
        %v1063 = vpop.permute.xlu0 %1062
        %1066 = vset.pattern.permute.xlu0 0
        %1067 = vperm.xlu0 %1066, %v981
        %v1068 = vpop.permute.xlu0 %1067
        %1071 = vset.pattern.permute.xlu0 0
        %1072 = vperm.xlu0 %1071, %v982
        %v1073 = vpop.permute.xlu0 %1072
        %1076 = vset.pattern.permute.xlu0 0
        %1077 = vperm.xlu0 %1076, %v983
        %v1078 = vpop.permute.xlu0 %1077
        %1081 = vset.pattern.permute.xlu0 0
        %1082 = vperm.xlu0 %1081, %v984
        %v1083 = vpop.permute.xlu0 %1082
        %1086 = vset.pattern.permute.xlu0 0
        %1087 = vperm.xlu0 %1086, %v985
        %v1088 = vpop.permute.xlu0 %1087
        %v1090 = vlaneseq
        %v1091 = vshrl.u32 %v1090, 7
        %v1092 = vsub.s32 0, %v1091
        %v1093 = vrot.slane %v1034, %v1092
        %v1094 = vadd.f32 %v1053, %v1093
        %v1095 = vadd.f32 %v1058, %v1093
        %v1096 = vadd.f32 %v1063, %v1093
        %v1097 = vadd.f32 %v1068, %v1093
        %v1098 = vadd.f32 %v1073, %v1093
        %v1099 = vadd.f32 %v1078, %v1093
        %v1100 = vadd.f32 %v1083, %v1093
        %v1101 = vadd.f32 %v1088, %v1093
        %v1102 = vtanh.pop %v1094
        %v1103 = vtanh.pop %v1095
        %v1104 = vtanh.pop %v1096
        %v1105 = vtanh.pop %v1097
        %v1106 = vtanh.pop %v1098
        %v1107 = vtanh.pop %v1099
        %v1108 = vtanh.pop %v1100
        %v1109 = vtanh.pop %v1101
        %v1110 = vmul.f32 %v1102, %v600
        %v1111 = vmul.f32 %v1103, %v601
        %v1112 = vmul.f32 %v1104, %v602
        %v1113 = vmul.f32 %v1105, %v603
        %v1114 = vmul.f32 %v1106, %v604
        %v1115 = vmul.f32 %v1107, %v605
        %v1116 = vmul.f32 %v1108, %v606
        %v1117 = vmul.f32 %v1109, %v607
        %v1118 = vpack.c.bf16 %v1111, %v1110
        %v1119 = vpack.c.bf16 %v1113, %v1112
        %v1120 = vpack.c.bf16 %v1115, %v1114
        %v1121 = vpack.c.bf16 %v1117, %v1116
        %v1123 = vsel %vm900, %v1118, 0
        %v1126 = vsel %vm900, %v1119, 0
        %v1129 = vsel %vm900, %v1120, 0
        %v1132 = vsel %vm900, %v1121, 0
        %1134 = vmatprep.subr.bf16.mxu0 0
        %1135 = vmatpush1.bf16.msra.mxu0 %v612
        %1136 = vmatprep.subr.bf16.mxu0 0
        %1137 = vmatpush1.bf16.msra.mxu0 %v613
        %1138 = vmatprep.subr.bf16.mxu0 0
        %1139 = vmatpush1.bf16.msra.mxu0 %v614
        %1140 = vmatprep.subr.bf16.mxu0 0
        %1141 = vmatpush1.bf16.msra.mxu0 %v615
        %1142 = vmatprep.subr.bf16.mxu0 0
        %1143 = vmatpush1.bf16.msra.mxu0 0
        %1144 = vmatprep.subr.bf16.mxu0 0
        %1145 = vmatpush1.bf16.msra.mxu0 0
        %1146 = vmatprep.subr.bf16.mxu0 0
        %1147 = vmatpush1.bf16.msra.mxu0 0
        %1148 = vmatprep.subr.bf16.mxu0 0
        %1149 = vmatpush1.bf16.msra.mxu0 0
        %1150 = vmatprep.subr.bf16.mxu0 0
        %1151 = vmatpush1.bf16.msra.mxu0 0
        %1152 = vmatprep.subr.bf16.mxu0 0
        %1153 = vmatpush1.bf16.msra.mxu0 0
        %1154 = vmatprep.subr.bf16.mxu0 0
        %1155 = vmatpush1.bf16.msra.mxu0 0
        %1156 = vmatprep.subr.bf16.mxu0 0
        %1157 = vmatpush1.bf16.msra.mxu0 0
        %1158 = vmatprep.subr.bf16.mxu0 0
        %1159 = vmatpush1.bf16.msra.mxu0 0
        %1160 = vmatprep.subr.bf16.mxu0 0
        %1161 = vmatpush1.bf16.msra.mxu0 0
        %1162 = vmatprep.subr.bf16.mxu0 0
        %1163 = vmatpush1.bf16.msra.mxu0 0
        %1164 = vmatprep.subr.bf16.mxu0 0
        %1165 = vmatpush1.bf16.msra.mxu0 0
        %1166 = vmatprep.mubr.bf16.mxu0 0
        %1167 = vmatmul.mubr.bf16.gmra.mrb[0].mxu0 %v1123
        %v1168 = vpop.f32.mrb[0].mxu0
        %v1169 = vadd.f32 0.0, %v1168
        %v1170 = vpop.f32.mrb[0].mxu0
        %v1171 = vpop.f32.mrb[0].mxu0
        %v1172 = vadd.f32 0.0, %v1171
        %v1173 = vpop.f32.mrb[0].mxu0
        %1174 = vmatprep.mubr.bf16.mxu0 0
        %1175 = vmatmul.mubr.bf16.gmra.mrb[0].mxu0 %v1126
        %v1176 = vpop.f32.mrb[0].mxu0
        %v1177 = vadd.f32 0.0, %v1176
        %v1178 = vpop.f32.mrb[0].mxu0
        %v1179 = vpop.f32.mrb[0].mxu0
        %v1180 = vadd.f32 0.0, %v1179
        %v1181 = vpop.f32.mrb[0].mxu0
        %1182 = vmatprep.mubr.bf16.mxu0 0
        %1183 = vmatmul.mubr.bf16.gmra.mrb[0].mxu0 %v1129
        %v1184 = vpop.f32.mrb[0].mxu0
        %v1185 = vadd.f32 0.0, %v1184
        %v1186 = vpop.f32.mrb[0].mxu0
        %v1187 = vpop.f32.mrb[0].mxu0
        %v1188 = vadd.f32 0.0, %v1187
        %v1189 = vpop.f32.mrb[0].mxu0
        %1190 = vmatprep.mubr.bf16.mxu0 0
        %1191 = vmatmul.mubr.bf16.gmra.mrb[0].mxu0 %v1132
        %v1192 = vpop.f32.mrb[0].mxu0
        %v1193 = vadd.f32 0.0, %v1192
        %v1194 = vpop.f32.mrb[0].mxu0
        %v1195 = vpop.f32.mrb[0].mxu0
        %v1196 = vadd.f32 0.0, %v1195
        %v1197 = vpop.f32.mrb[0].mxu0
        %1198 = vdwg.mxu0
        %v1199 = vmax.f32 %v948, 0.0
        %v1200 = vmax.f32 %v951, 0.0
        %v1201 = vmax.f32 %v956, 0.0
        %v1202 = vmax.f32 %v959, 0.0
        %v1203 = vmax.f32 %v964, 0.0
        %v1204 = vmax.f32 %v967, 0.0
        %v1205 = vmax.f32 %v972, 0.0
        %v1206 = vmax.f32 %v975, 0.0
        %v1207 = vmax.f32 %v1169, 0.0
        %v1208 = vmax.f32 %v1172, 0.0
        %v1209 = vmax.f32 %v1177, 0.0
        %v1210 = vmax.f32 %v1180, 0.0
        %v1211 = vmax.f32 %v1185, 0.0
        %v1212 = vmax.f32 %v1188, 0.0
        %v1213 = vmax.f32 %v1193, 0.0
        %v1214 = vmax.f32 %v1196, 0.0
        %v1215 = vadd.f32 %v1199, %v576
        %v1216 = vadd.f32 %v1200, %v577
        %v1217 = vadd.f32 %v1201, %v578
        %v1218 = vadd.f32 %v1202, %v579
        %v1219 = vadd.f32 %v1203, %v580
        %v1220 = vadd.f32 %v1204, %v581
        %v1221 = vadd.f32 %v1205, %v582
        %v1222 = vadd.f32 %v1206, %v583
        %v1223 = vadd.f32 %v1207, %v584
        %v1224 = vadd.f32 %v1208, %v585
        %v1225 = vadd.f32 %v1209, %v586
        %v1226 = vadd.f32 %v1210, %v587
        %v1227 = vadd.f32 %v1211, %v588
        %v1228 = vadd.f32 %v1212, %v589
        %v1229 = vadd.f32 %v1213, %v590
        %v1230 = vadd.f32 %v1214, %v591
        %v1231 = vpack.c.bf16 %v1216, %v1215
        %v1232 = vpack.c.bf16 %v1218, %v1217
        %v1233 = vpack.c.bf16 %v1220, %v1219
        %v1234 = vpack.c.bf16 %v1222, %v1221
        %v1235 = vpack.c.bf16 %v1224, %v1223
        %v1236 = vpack.c.bf16 %v1226, %v1225
        %v1237 = vpack.c.bf16 %v1228, %v1227
        %v1238 = vpack.c.bf16 %v1230, %v1229
        %1239 = vrot.lane.b32.xlu0 %v628, 126
        %v1240 = vpop.permute.xlu0 %1239
        %1241 = vrot.lane.b32.xlu0 %v629, 126
        %v1242 = vpop.permute.xlu0 %1241
        %v1246 = vsel %vm632, %v1231, 0
        %v1249 = vsel %vm632, %v1232, 0
        %v1252 = vsel %vm632, %v1233, 0
        %v1255 = vsel %vm632, %v1234, 0
        %v1258 = vsel %vm632, %v1235, 0
        %v1261 = vsel %vm632, %v1236, 0
        %v1264 = vsel %vm632, %v1237, 0
        %v1267 = vsel %vm632, %v1238, 0
        %1269 = vmatprep.subr.bf16.mxu0 0
        %1270 = vmatpush1.bf16.msra.mxu0 %v1240
        %1271 = vmatprep.subr.bf16.mxu0 0
        %1272 = vmatpush1.bf16.msra.mxu0 %v1242
        %1273 = vmatprep.subr.bf16.mxu0 0
        %1274 = vmatpush1.bf16.msra.mxu0 0
        %1275 = vmatprep.subr.bf16.mxu0 0
        %1276 = vmatpush1.bf16.msra.mxu0 0
        %1277 = vmatprep.subr.bf16.mxu0 0
        %1278 = vmatpush1.bf16.msra.mxu0 0
        %1279 = vmatprep.subr.bf16.mxu0 0
        %1280 = vmatpush1.bf16.msra.mxu0 0
        %1281 = vmatprep.subr.bf16.mxu0 0
        %1282 = vmatpush1.bf16.msra.mxu0 0
        %1283 = vmatprep.subr.bf16.mxu0 0
        %1284 = vmatpush1.bf16.msra.mxu0 0
        %1285 = vmatprep.subr.bf16.mxu0 0
        %1286 = vmatpush1.bf16.msra.mxu0 0
        %1287 = vmatprep.subr.bf16.mxu0 0
        %1288 = vmatpush1.bf16.msra.mxu0 0
        %1289 = vmatprep.subr.bf16.mxu0 0
        %1290 = vmatpush1.bf16.msra.mxu0 0
        %1291 = vmatprep.subr.bf16.mxu0 0
        %1292 = vmatpush1.bf16.msra.mxu0 0
        %1293 = vmatprep.subr.bf16.mxu0 0
        %1294 = vmatpush1.bf16.msra.mxu0 0
        %1295 = vmatprep.subr.bf16.mxu0 0
        %1296 = vmatpush1.bf16.msra.mxu0 0
        %1297 = vmatprep.subr.bf16.mxu0 0
        %1298 = vmatpush1.bf16.msra.mxu0 0
        %1299 = vmatprep.subr.bf16.mxu0 0
        %1300 = vmatpush1.bf16.msra.mxu0 0
        %1301 = vmatprep.mubr.bf16.mxu0 0
        %1302 = vmatmul.mubr.bf16.gmra.mrb[0].mxu0 %v1246
        %v1303 = vpop.f32.mrb[0].mxu0
        %v1304 = vadd.f32 0.0, %v1303
        %v1305 = vpop.f32.mrb[0].mxu0
        %v1306 = vpop.f32.mrb[0].mxu0
        %v1307 = vadd.f32 0.0, %v1306
        %v1308 = vpop.f32.mrb[0].mxu0
        %1309 = vmatprep.mubr.bf16.mxu0 0
        %1310 = vmatmul.mubr.bf16.gmra.mrb[0].mxu0 %v1249
        %v1311 = vpop.f32.mrb[0].mxu0
        %v1312 = vadd.f32 0.0, %v1311
        %v1313 = vpop.f32.mrb[0].mxu0
        %v1314 = vpop.f32.mrb[0].mxu0
        %v1315 = vadd.f32 0.0, %v1314
        %v1316 = vpop.f32.mrb[0].mxu0
        %1317 = vmatprep.mubr.bf16.mxu0 0
        %1318 = vmatmul.mubr.bf16.gmra.mrb[0].mxu0 %v1252
        %v1319 = vpop.f32.mrb[0].mxu0
        %v1320 = vadd.f32 0.0, %v1319
        %v1321 = vpop.f32.mrb[0].mxu0
        %v1322 = vpop.f32.mrb[0].mxu0
        %v1323 = vadd.f32 0.0, %v1322
        %v1324 = vpop.f32.mrb[0].mxu0
        %1325 = vmatprep.mubr.bf16.mxu0 0
        %1326 = vmatmul.mubr.bf16.gmra.mrb[0].mxu0 %v1255
        %v1327 = vpop.f32.mrb[0].mxu0
        %v1328 = vadd.f32 0.0, %v1327
        %v1329 = vpop.f32.mrb[0].mxu0
        %v1330 = vpop.f32.mrb[0].mxu0
        %v1331 = vadd.f32 0.0, %v1330
        %v1332 = vpop.f32.mrb[0].mxu0
        %1333 = vmatprep.mubr.bf16.mxu0 0
        %1334 = vmatmul.mubr.bf16.gmra.mrb[0].mxu0 %v1258
        %v1335 = vpop.f32.mrb[0].mxu0
        %v1336 = vadd.f32 0.0, %v1335
        %v1337 = vpop.f32.mrb[0].mxu0
        %v1338 = vpop.f32.mrb[0].mxu0
        %v1339 = vadd.f32 0.0, %v1338
        %v1340 = vpop.f32.mrb[0].mxu0
        %1341 = vmatprep.mubr.bf16.mxu0 0
        %1342 = vmatmul.mubr.bf16.gmra.mrb[0].mxu0 %v1261
        %v1343 = vpop.f32.mrb[0].mxu0
        %v1344 = vadd.f32 0.0, %v1343
        %v1345 = vpop.f32.mrb[0].mxu0
        %v1346 = vpop.f32.mrb[0].mxu0
        %v1347 = vadd.f32 0.0, %v1346
        %v1348 = vpop.f32.mrb[0].mxu0
        %1349 = vmatprep.mubr.bf16.mxu0 0
        %1350 = vmatmul.mubr.bf16.gmra.mrb[0].mxu0 %v1264
        %v1351 = vpop.f32.mrb[0].mxu0
        %v1352 = vadd.f32 0.0, %v1351
        %v1353 = vpop.f32.mrb[0].mxu0
        %v1354 = vpop.f32.mrb[0].mxu0
        %v1355 = vadd.f32 0.0, %v1354
        %v1356 = vpop.f32.mrb[0].mxu0
        %1357 = vmatprep.mubr.bf16.mxu0 0
        %1358 = vmatmul.mubr.bf16.gmra.mrb[0].mxu0 %v1267
        %v1359 = vpop.f32.mrb[0].mxu0
        %v1360 = vadd.f32 0.0, %v1359
        %v1361 = vpop.f32.mrb[0].mxu0
        %v1362 = vpop.f32.mrb[0].mxu0
        %v1363 = vadd.f32 0.0, %v1362
        %v1364 = vpop.f32.mrb[0].mxu0
        %1365 = vdwg.mxu0
        %s1366 = sld [smem:[#allocation6 + $0x1]]
        %v1367 = vstv %s1366
        %v1368 = vadd.f32 %v1304, %v1367
        %v1369 = vadd.f32 %v1307, %v1367
        %v1370 = vadd.f32 %v1312, %v1367
        %v1371 = vadd.f32 %v1315, %v1367
        %v1372 = vadd.f32 %v1320, %v1367
        %v1373 = vadd.f32 %v1323, %v1367
        %v1374 = vadd.f32 %v1328, %v1367
        %v1375 = vadd.f32 %v1331, %v1367
        %1384 = vrot.lane.b32.xlu0 %v1304, 127
        %v1385 = vpop.permute.xlu0 %1384
        %1386 = vrot.lane.b32.xlu0 %v1307, 127
        %v1387 = vpop.permute.xlu0 %1386
        %1388 = vrot.lane.b32.xlu0 %v1312, 127
        %v1389 = vpop.permute.xlu0 %1388
        %1390 = vrot.lane.b32.xlu0 %v1315, 127
        %v1391 = vpop.permute.xlu0 %1390
        %1392 = vrot.lane.b32.xlu0 %v1320, 127
        %v1393 = vpop.permute.xlu0 %1392
        %1394 = vrot.lane.b32.xlu0 %v1323, 127
        %v1395 = vpop.permute.xlu0 %1394
        %1396 = vrot.lane.b32.xlu0 %v1328, 127
        %v1397 = vpop.permute.xlu0 %1396
        %1398 = vrot.lane.b32.xlu0 %v1331, 127
        %v1399 = vpop.permute.xlu0 %1398
        %1408 = vxpose.xlu0.b32.start [1/16] %v1385, 128
        %1409 = vxpose.xlu0.b32.cont [2/16] %v1387, 128
        %1410 = vxpose.xlu0.b32.cont [3/16] %v1389, 128
        %1411 = vxpose.xlu0.b32.cont [4/16] %v1391, 128
        %1412 = vxpose.xlu0.b32.cont [5/16] %v1393, 128
        %1413 = vxpose.xlu0.b32.cont [6/16] %v1395, 128
        %1414 = vxpose.xlu0.b32.cont [7/16] %v1397, 128
        %1415 = vxpose.xlu0.b32.cont [8/16] %v1399, 128
        %1416 = vxpose.xlu0.b32.cont [9/16] 0.0, 128
        %1417 = vxpose.xlu0.b32.cont [10/16] 0.0, 128
        %1418 = vxpose.xlu0.b32.cont [11/16] 0.0, 128
        %1419 = vxpose.xlu0.b32.cont [12/16] 0.0, 128
        %1420 = vxpose.xlu0.b32.cont [13/16] 0.0, 128
        %1421 = vxpose.xlu0.b32.cont [14/16] 0.0, 128
        %1422 = vxpose.xlu0.b32.cont [15/16] 0.0, 128
        %1423 = vxpose.xlu0.b32.end [16/16] 0.0, 128
        %v1424 = vpop.trf.xlu0
        %v1425 = vpop.trf.xlu0
        %v1426 = vpop.trf.xlu0
        %v1427 = vpop.trf.xlu0
        %v1428 = vpop.trf.xlu0
        %v1429 = vpop.trf.xlu0
        %v1430 = vpop.trf.xlu0
        %v1431 = vpop.trf.xlu0
        %v1432 = vpop.trf.xlu0
        %v1433 = vpop.trf.xlu0
        %v1434 = vpop.trf.xlu0
        %v1435 = vpop.trf.xlu0
        %v1436 = vpop.trf.xlu0
        %v1437 = vpop.trf.xlu0
        %v1438 = vpop.trf.xlu0
        %v1439 = vpop.trf.xlu0
        %1441 = vset.pattern.permute.xlu0 0
        %1442 = vperm.xlu0 %1441, %v1368
        %v1443 = vpop.permute.xlu0 %1442
        %1446 = vset.pattern.permute.xlu0 0
        %1447 = vperm.xlu0 %1446, %v1369
        %v1448 = vpop.permute.xlu0 %1447
        %1451 = vset.pattern.permute.xlu0 0
        %1452 = vperm.xlu0 %1451, %v1370
        %v1453 = vpop.permute.xlu0 %1452
        %1456 = vset.pattern.permute.xlu0 0
        %1457 = vperm.xlu0 %1456, %v1371
        %v1458 = vpop.permute.xlu0 %1457
        %1461 = vset.pattern.permute.xlu0 0
        %1462 = vperm.xlu0 %1461, %v1372
        %v1463 = vpop.permute.xlu0 %1462
        %1466 = vset.pattern.permute.xlu0 0
        %1467 = vperm.xlu0 %1466, %v1373
        %v1468 = vpop.permute.xlu0 %1467
        %1471 = vset.pattern.permute.xlu0 0
        %1472 = vperm.xlu0 %1471, %v1374
        %v1473 = vpop.permute.xlu0 %1472
        %1476 = vset.pattern.permute.xlu0 0
        %1477 = vperm.xlu0 %1476, %v1375
        %v1478 = vpop.permute.xlu0 %1477
        %v1480 = vlaneseq
        %v1481 = vshrl.u32 %v1480, 7
        %v1482 = vsub.s32 0, %v1481
        %v1483 = vrot.slane %v1424, %v1482
        %v1484 = vadd.f32 %v1443, %v1483
        %v1485 = vadd.f32 %v1448, %v1483
        %v1486 = vadd.f32 %v1453, %v1483
        %v1487 = vadd.f32 %v1458, %v1483
        %v1488 = vadd.f32 %v1463, %v1483
        %v1489 = vadd.f32 %v1468, %v1483
        %v1490 = vadd.f32 %v1473, %v1483
        %v1491 = vadd.f32 %v1478, %v1483
        %v1492 = vtanh.pop %v1484
        %v1493 = vtanh.pop %v1485
        %v1494 = vtanh.pop %v1486
        %v1495 = vtanh.pop %v1487
        %v1496 = vtanh.pop %v1488
        %v1497 = vtanh.pop %v1489
        %v1498 = vtanh.pop %v1490
        %v1499 = vtanh.pop %v1491
        %v1500 = vmul.f32 %v1492, %v592
        %v1501 = vmul.f32 %v1493, %v593
        %v1502 = vmul.f32 %v1494, %v594
        %v1503 = vmul.f32 %v1495, %v595
        %v1504 = vmul.f32 %v1496, %v596
        %v1505 = vmul.f32 %v1497, %v597
        %v1506 = vmul.f32 %v1498, %v598
        %v1507 = vmul.f32 %v1499, %v599
        %v1508 = vpack.c.bf16 %v1501, %v1500
        %v1509 = vpack.c.bf16 %v1503, %v1502
        %v1510 = vpack.c.bf16 %v1505, %v1504
        %v1511 = vpack.c.bf16 %v1507, %v1506
        %v1513 = vsel %vm900, %v1508, 0
        %v1516 = vsel %vm900, %v1509, 0
        %v1519 = vsel %vm900, %v1510, 0
        %v1522 = vsel %vm900, %v1511, 0
        %1524 = vmatprep.subr.bf16.mxu0 0
        %1525 = vmatpush1.bf16.msra.mxu0 %v1231
        %1526 = vmatprep.subr.bf16.mxu0 0
        %1527 = vmatpush1.bf16.msra.mxu0 %v1232
        %1528 = vmatprep.subr.bf16.mxu0 0
        %1529 = vmatpush1.bf16.msra.mxu0 %v1233
        %1530 = vmatprep.subr.bf16.mxu0 0
        %1531 = vmatpush1.bf16.msra.mxu0 %v1234
        %1532 = vmatprep.subr.bf16.mxu0 0
        %1533 = vmatpush1.bf16.msra.mxu0 0
        %1534 = vmatprep.subr.bf16.mxu0 0
        %1535 = vmatpush1.bf16.msra.mxu0 0
        %1536 = vmatprep.subr.bf16.mxu0 0
        %1537 = vmatpush1.bf16.msra.mxu0 0
        %1538 = vmatprep.subr.bf16.mxu0 0
        %1539 = vmatpush1.bf16.msra.mxu0 0
        %1540 = vmatprep.subr.bf16.mxu0 0
        %1541 = vmatpush1.bf16.msra.mxu0 0
        %1542 = vmatprep.subr.bf16.mxu0 0
        %1543 = vmatpush1.bf16.msra.mxu0 0
        %1544 = vmatprep.subr.bf16.mxu0 0
        %1545 = vmatpush1.bf16.msra.mxu0 0
        %1546 = vmatprep.subr.bf16.mxu0 0
        %1547 = vmatpush1.bf16.msra.mxu0 0
        %1548 = vmatprep.subr.bf16.mxu0 0
        %1549 = vmatpush1.bf16.msra.mxu0 0
        %1550 = vmatprep.subr.bf16.mxu0 0
        %1551 = vmatpush1.bf16.msra.mxu0 0
        %1552 = vmatprep.subr.bf16.mxu0 0
        %1553 = vmatpush1.bf16.msra.mxu0 0
        %1554 = vmatprep.subr.bf16.mxu0 0
        %1555 = vmatpush1.bf16.msra.mxu0 0
        %1556 = vmatprep.mubr.bf16.mxu0 0
        %1557 = vmatmul.mubr.bf16.gmra.mrb[0].mxu0 %v1513
        %v1558 = vpop.f32.mrb[0].mxu0
        %v1559 = vadd.f32 0.0, %v1558
        %v1560 = vpop.f32.mrb[0].mxu0
        %v1561 = vpop.f32.mrb[0].mxu0
        %v1562 = vadd.f32 0.0, %v1561
        %v1563 = vpop.f32.mrb[0].mxu0
        %1564 = vmatprep.mubr.bf16.mxu0 0
        %1565 = vmatmul.mubr.bf16.gmra.mrb[0].mxu0 %v1516
        %v1566 = vpop.f32.mrb[0].mxu0
        %v1567 = vadd.f32 0.0, %v1566
        %v1568 = vpop.f32.mrb[0].mxu0
        %v1569 = vpop.f32.mrb[0].mxu0
        %v1570 = vadd.f32 0.0, %v1569
        %v1571 = vpop.f32.mrb[0].mxu0
        %1572 = vmatprep.mubr.bf16.mxu0 0
        %1573 = vmatmul.mubr.bf16.gmra.mrb[0].mxu0 %v1519
        %v1574 = vpop.f32.mrb[0].mxu0
        %v1575 = vadd.f32 0.0, %v1574
        %v1576 = vpop.f32.mrb[0].mxu0
        %v1577 = vpop.f32.mrb[0].mxu0
        %v1578 = vadd.f32 0.0, %v1577
        %v1579 = vpop.f32.mrb[0].mxu0
        %1580 = vmatprep.mubr.bf16.mxu0 0
        %1581 = vmatmul.mubr.bf16.gmra.mrb[0].mxu0 %v1522
        %v1582 = vpop.f32.mrb[0].mxu0
        %v1583 = vadd.f32 0.0, %v1582
        %v1584 = vpop.f32.mrb[0].mxu0
        %v1585 = vpop.f32.mrb[0].mxu0
        %v1586 = vadd.f32 0.0, %v1585
        %v1587 = vpop.f32.mrb[0].mxu0
        %1588 = vdwg.mxu0
        %v1589 = vadd.f32 %v1336, %v1367
        %v1590 = vadd.f32 %v1339, %v1367
        %v1591 = vadd.f32 %v1344, %v1367
        %v1592 = vadd.f32 %v1347, %v1367
        %v1593 = vadd.f32 %v1352, %v1367
        %v1594 = vadd.f32 %v1355, %v1367
        %v1595 = vadd.f32 %v1360, %v1367
        %v1596 = vadd.f32 %v1363, %v1367
        %1605 = vrot.lane.b32.xlu0 %v1336, 127
        %v1606 = vpop.permute.xlu0 %1605
        %1607 = vrot.lane.b32.xlu0 %v1339, 127
        %v1608 = vpop.permute.xlu0 %1607
        %1609 = vrot.lane.b32.xlu0 %v1344, 127
        %v1610 = vpop.permute.xlu0 %1609
        %1611 = vrot.lane.b32.xlu0 %v1347, 127
        %v1612 = vpop.permute.xlu0 %1611
        %1613 = vrot.lane.b32.xlu0 %v1352, 127
        %v1614 = vpop.permute.xlu0 %1613
        %1615 = vrot.lane.b32.xlu0 %v1355, 127
        %v1616 = vpop.permute.xlu0 %1615
        %1617 = vrot.lane.b32.xlu0 %v1360, 127
        %v1618 = vpop.permute.xlu0 %1617
        %1619 = vrot.lane.b32.xlu0 %v1363, 127
        %v1620 = vpop.permute.xlu0 %1619
        %1629 = vxpose.xlu0.b32.start [1/16] %v1606, 128
        %1630 = vxpose.xlu0.b32.cont [2/16] %v1608, 128
        %1631 = vxpose.xlu0.b32.cont [3/16] %v1610, 128
        %1632 = vxpose.xlu0.b32.cont [4/16] %v1612, 128
        %1633 = vxpose.xlu0.b32.cont [5/16] %v1614, 128
        %1634 = vxpose.xlu0.b32.cont [6/16] %v1616, 128
        %1635 = vxpose.xlu0.b32.cont [7/16] %v1618, 128
        %1636 = vxpose.xlu0.b32.cont [8/16] %v1620, 128
        %1637 = vxpose.xlu0.b32.cont [9/16] 0.0, 128
        %1638 = vxpose.xlu0.b32.cont [10/16] 0.0, 128
        %1639 = vxpose.xlu0.b32.cont [11/16] 0.0, 128
        %1640 = vxpose.xlu0.b32.cont [12/16] 0.0, 128
        %1641 = vxpose.xlu0.b32.cont [13/16] 0.0, 128
        %1642 = vxpose.xlu0.b32.cont [14/16] 0.0, 128
        %1643 = vxpose.xlu0.b32.cont [15/16] 0.0, 128
        %1644 = vxpose.xlu0.b32.end [16/16] 0.0, 128
        %v1645 = vpop.trf.xlu0
        %v1646 = vpop.trf.xlu0
        %v1647 = vpop.trf.xlu0
        %v1648 = vpop.trf.xlu0
        %v1649 = vpop.trf.xlu0
        %v1650 = vpop.trf.xlu0
        %v1651 = vpop.trf.xlu0
        %v1652 = vpop.trf.xlu0
        %v1653 = vpop.trf.xlu0
        %v1654 = vpop.trf.xlu0
        %v1655 = vpop.trf.xlu0
        %v1656 = vpop.trf.xlu0
        %v1657 = vpop.trf.xlu0
        %v1658 = vpop.trf.xlu0
        %v1659 = vpop.trf.xlu0
        %v1660 = vpop.trf.xlu0
        %1662 = vset.pattern.permute.xlu0 0
        %1663 = vperm.xlu0 %1662, %v1589
        %v1664 = vpop.permute.xlu0 %1663
        %1667 = vset.pattern.permute.xlu0 0
        %1668 = vperm.xlu0 %1667, %v1590
        %v1669 = vpop.permute.xlu0 %1668
        %1672 = vset.pattern.permute.xlu0 0
        %1673 = vperm.xlu0 %1672, %v1591
        %v1674 = vpop.permute.xlu0 %1673
        %1677 = vset.pattern.permute.xlu0 0
        %1678 = vperm.xlu0 %1677, %v1592
        %v1679 = vpop.permute.xlu0 %1678
        %1682 = vset.pattern.permute.xlu0 0
        %1683 = vperm.xlu0 %1682, %v1593
        %v1684 = vpop.permute.xlu0 %1683
        %1687 = vset.pattern.permute.xlu0 0
        %1688 = vperm.xlu0 %1687, %v1594
        %v1689 = vpop.permute.xlu0 %1688
        %1692 = vset.pattern.permute.xlu0 0
        %1693 = vperm.xlu0 %1692, %v1595
        %v1694 = vpop.permute.xlu0 %1693
        %1697 = vset.pattern.permute.xlu0 0
        %1698 = vperm.xlu0 %1697, %v1596
        %v1699 = vpop.permute.xlu0 %1698
        %v1701 = vlaneseq
        %v1702 = vshrl.u32 %v1701, 7
        %v1703 = vsub.s32 0, %v1702
        %v1704 = vrot.slane %v1645, %v1703
        %v1705 = vadd.f32 %v1664, %v1704
        %v1706 = vadd.f32 %v1669, %v1704
        %v1707 = vadd.f32 %v1674, %v1704
        %v1708 = vadd.f32 %v1679, %v1704
        %v1709 = vadd.f32 %v1684, %v1704
        %v1710 = vadd.f32 %v1689, %v1704
        %v1711 = vadd.f32 %v1694, %v1704
        %v1712 = vadd.f32 %v1699, %v1704
        %v1713 = vtanh.pop %v1705
        %v1714 = vtanh.pop %v1706
        %v1715 = vtanh.pop %v1707
        %v1716 = vtanh.pop %v1708
        %v1717 = vtanh.pop %v1709
        %v1718 = vtanh.pop %v1710
        %v1719 = vtanh.pop %v1711
        %v1720 = vtanh.pop %v1712
        %v1721 = vmul.f32 %v1713, %v600
        %v1722 = vmul.f32 %v1714, %v601
        %v1723 = vmul.f32 %v1715, %v602
        %v1724 = vmul.f32 %v1716, %v603
        %v1725 = vmul.f32 %v1717, %v604
        %v1726 = vmul.f32 %v1718, %v605
        %v1727 = vmul.f32 %v1719, %v606
        %v1728 = vmul.f32 %v1720, %v607
        %v1729 = vpack.c.bf16 %v1722, %v1721
        %v1730 = vpack.c.bf16 %v1724, %v1723
        %v1731 = vpack.c.bf16 %v1726, %v1725
        %v1732 = vpack.c.bf16 %v1728, %v1727
        %v1734 = vsel %vm900, %v1729, 0
        %v1737 = vsel %vm900, %v1730, 0
        %v1740 = vsel %vm900, %v1731, 0
        %v1743 = vsel %vm900, %v1732, 0
        %1745 = vmatprep.subr.bf16.mxu0 0
        %1746 = vmatpush1.bf16.msra.mxu0 %v1235
        %1747 = vmatprep.subr.bf16.mxu0 0
        %1748 = vmatpush1.bf16.msra.mxu0 %v1236
        %1749 = vmatprep.subr.bf16.mxu0 0
        %1750 = vmatpush1.bf16.msra.mxu0 %v1237
        %1751 = vmatprep.subr.bf16.mxu0 0
        %1752 = vmatpush1.bf16.msra.mxu0 %v1238
        %1753 = vmatprep.subr.bf16.mxu0 0
        %1754 = vmatpush1.bf16.msra.mxu0 0
        %1755 = vmatprep.subr.bf16.mxu0 0
        %1756 = vmatpush1.bf16.msra.mxu0 0
        %1757 = vmatprep.subr.bf16.mxu0 0
        %1758 = vmatpush1.bf16.msra.mxu0 0
        %1759 = vmatprep.subr.bf16.mxu0 0
        %1760 = vmatpush1.bf16.msra.mxu0 0
        %1761 = vmatprep.subr.bf16.mxu0 0
        %1762 = vmatpush1.bf16.msra.mxu0 0
        %1763 = vmatprep.subr.bf16.mxu0 0
        %1764 = vmatpush1.bf16.msra.mxu0 0
        %1765 = vmatprep.subr.bf16.mxu0 0
        %1766 = vmatpush1.bf16.msra.mxu0 0
        %1767 = vmatprep.subr.bf16.mxu0 0
        %1768 = vmatpush1.bf16.msra.mxu0 0
        %1769 = vmatprep.subr.bf16.mxu0 0
        %1770 = vmatpush1.bf16.msra.mxu0 0
        %1771 = vmatprep.subr.bf16.mxu0 0
        %1772 = vmatpush1.bf16.msra.mxu0 0
        %1773 = vmatprep.subr.bf16.mxu0 0
        %1774 = vmatpush1.bf16.msra.mxu0 0
        %1775 = vmatprep.subr.bf16.mxu0 0
        %1776 = vmatpush1.bf16.msra.mxu0 0
        %1777 = vmatprep.mubr.bf16.mxu0 0
        %1778 = vmatmul.mubr.bf16.gmra.mrb[0].mxu0 %v1734
        %v1779 = vpop.f32.mrb[0].mxu0
        %v1780 = vadd.f32 0.0, %v1779
        %v1781 = vpop.f32.mrb[0].mxu0
        %v1782 = vpop.f32.mrb[0].mxu0
        %v1783 = vadd.f32 0.0, %v1782
        %v1784 = vpop.f32.mrb[0].mxu0
        %1785 = vmatprep.mubr.bf16.mxu0 0
        %1786 = vmatmul.mubr.bf16.gmra.mrb[0].mxu0 %v1737
        %v1787 = vpop.f32.mrb[0].mxu0
        %v1788 = vadd.f32 0.0, %v1787
        %v1789 = vpop.f32.mrb[0].mxu0
        %v1790 = vpop.f32.mrb[0].mxu0
        %v1791 = vadd.f32 0.0, %v1790
        %v1792 = vpop.f32.mrb[0].mxu0
        %1793 = vmatprep.mubr.bf16.mxu0 0
        %1794 = vmatmul.mubr.bf16.gmra.mrb[0].mxu0 %v1740
        %v1795 = vpop.f32.mrb[0].mxu0
        %v1796 = vadd.f32 0.0, %v1795
        %v1797 = vpop.f32.mrb[0].mxu0
        %v1798 = vpop.f32.mrb[0].mxu0
        %v1799 = vadd.f32 0.0, %v1798
        %v1800 = vpop.f32.mrb[0].mxu0
        %1801 = vmatprep.mubr.bf16.mxu0 0
        %1802 = vmatmul.mubr.bf16.gmra.mrb[0].mxu0 %v1743
        %v1803 = vpop.f32.mrb[0].mxu0
        %v1804 = vadd.f32 0.0, %v1803
        %v1805 = vpop.f32.mrb[0].mxu0
        %v1806 = vpop.f32.mrb[0].mxu0
        %v1807 = vadd.f32 0.0, %v1806
        %v1808 = vpop.f32.mrb[0].mxu0
        %1809 = vdwg.mxu0
        %v1810 = vmax.f32 %v1559, 0.0
        %v1811 = vmax.f32 %v1562, 0.0
        %v1812 = vmax.f32 %v1567, 0.0
        %v1813 = vmax.f32 %v1570, 0.0
        %v1814 = vmax.f32 %v1575, 0.0
        %v1815 = vmax.f32 %v1578, 0.0
        %v1816 = vmax.f32 %v1583, 0.0
        %v1817 = vmax.f32 %v1586, 0.0
        %v1818 = vmax.f32 %v1780, 0.0
        %v1819 = vmax.f32 %v1783, 0.0
        %v1820 = vmax.f32 %v1788, 0.0
        %v1821 = vmax.f32 %v1791, 0.0
        %v1822 = vmax.f32 %v1796, 0.0
        %v1823 = vmax.f32 %v1799, 0.0
        %v1824 = vmax.f32 %v1804, 0.0
        %v1825 = vmax.f32 %v1807, 0.0
        %v1826 = vadd.f32 %v1810, %v576
        %v1827 = vadd.f32 %v1811, %v577
        %v1828 = vadd.f32 %v1812, %v578
        %v1829 = vadd.f32 %v1813, %v579
        %v1830 = vadd.f32 %v1814, %v580
        %v1831 = vadd.f32 %v1815, %v581
        %v1832 = vadd.f32 %v1816, %v582
        %v1833 = vadd.f32 %v1817, %v583
        %v1834 = vadd.f32 %v1818, %v584
        %v1835 = vadd.f32 %v1819, %v585
        %v1836 = vadd.f32 %v1820, %v586
        %v1837 = vadd.f32 %v1821, %v587
        %v1838 = vadd.f32 %v1822, %v588
        %v1839 = vadd.f32 %v1823, %v589
        %v1840 = vadd.f32 %v1824, %v590
        %v1841 = vadd.f32 %v1825, %v591
        %v1842 = vpack.c.bf16 %v1827, %v1826
        %v1843 = vpack.c.bf16 %v1829, %v1828
        %v1844 = vpack.c.bf16 %v1831, %v1830
        %v1845 = vpack.c.bf16 %v1833, %v1832
        %v1846 = vpack.c.bf16 %v1835, %v1834
        %v1847 = vpack.c.bf16 %v1837, %v1836
        %v1848 = vpack.c.bf16 %v1839, %v1838
        %v1849 = vpack.c.bf16 %v1841, %v1840
        %v1850 = vld [vmem:[%s6] sm:$0xf]
        %v1851 = vld [vmem:[%s6 + $0x4] sm:$0xf]
        %v1852 = vld [vmem:[%s6 + $0x8] sm:$0xf]
        %v1853 = vld [vmem:[%s6 + $0xc] sm:$0xf]
        %v1854 = vld [vmem:[%s7] sm:$0x1]
        %v1856 = vlaneseq
        %v1857 = vshrl.u32 %v1856, 7
        %v1858 = vsub.s32 0, %v1857
        %v1859 = vrot.slane %v1854, %v1858
        %v1865 = vunpack.c.l.b16 %v1850
        %v1866 = vunpack.c.l.b16 %v1851
        %v1867 = vunpack.c.l.b16 %v1852
        %v1868 = vunpack.c.l.b16 %v1853
        %v1869 = vpack.c.b16 %v1866, %v1865
        %v1870 = vpack.c.b16 %v1868, %v1867
        %v1874 = vsel %vm632, %v1842, 0
        %v1877 = vsel %vm632, %v1843, 0
        %v1880 = vsel %vm632, %v1844, 0
        %v1883 = vsel %vm632, %v1845, 0
        %v1886 = vsel %vm632, %v1846, 0
        %v1889 = vsel %vm632, %v1847, 0
        %v1892 = vsel %vm632, %v1848, 0
        %v1895 = vsel %vm632, %v1849, 0
        %1897 = vmatprep.subr.bf16.mxu0 0
        %1898 = vmatpush1.bf16.msra.mxu0 %v1869
        %1899 = vmatprep.subr.bf16.mxu0 0
        %1900 = vmatpush1.bf16.msra.mxu0 %v1870
        %1901 = vmatprep.subr.bf16.mxu0 0
        %1902 = vmatpush1.bf16.msra.mxu0 0
        %1903 = vmatprep.subr.bf16.mxu0 0
        %1904 = vmatpush1.bf16.msra.mxu0 0
        %1905 = vmatprep.subr.bf16.mxu0 0
        %1906 = vmatpush1.bf16.msra.mxu0 0
        %1907 = vmatprep.subr.bf16.mxu0 0
        %1908 = vmatpush1.bf16.msra.mxu0 0
        %1909 = vmatprep.subr.bf16.mxu0 0
        %1910 = vmatpush1.bf16.msra.mxu0 0
        %1911 = vmatprep.subr.bf16.mxu0 0
        %1912 = vmatpush1.bf16.msra.mxu0 0
        %1913 = vmatprep.subr.bf16.mxu0 0
        %1914 = vmatpush1.bf16.msra.mxu0 0
        %1915 = vmatprep.subr.bf16.mxu0 0
        %1916 = vmatpush1.bf16.msra.mxu0 0
        %1917 = vmatprep.subr.bf16.mxu0 0
        %1918 = vmatpush1.bf16.msra.mxu0 0
        %1919 = vmatprep.subr.bf16.mxu0 0
        %1920 = vmatpush1.bf16.msra.mxu0 0
        %1921 = vmatprep.subr.bf16.mxu0 0
        %1922 = vmatpush1.bf16.msra.mxu0 0
        %1923 = vmatprep.subr.bf16.mxu0 0
        %1924 = vmatpush1.bf16.msra.mxu0 0
        %1925 = vmatprep.subr.bf16.mxu0 0
        %1926 = vmatpush1.bf16.msra.mxu0 0
        %1927 = vmatprep.subr.bf16.mxu0 0
        %1928 = vmatpush1.bf16.msra.mxu0 0
        %1929 = vmatprep.mubr.bf16.mxu0 0
        %1930 = vmatmul.mubr.bf16.gmra.mrb[0].mxu0 %v1874
        %v1931 = vpop.f32.mrb[0].mxu0
        %v1932 = vadd.f32 %v1859, %v1931
        %v1933 = vpop.f32.mrb[0].mxu0
        %v1934 = vpop.f32.mrb[0].mxu0
        %v1935 = vadd.f32 %v1859, %v1934
        %v1936 = vpop.f32.mrb[0].mxu0
        %1937 = vmatprep.mubr.bf16.mxu0 0
        %1938 = vmatmul.mubr.bf16.gmra.mrb[0].mxu0 %v1877
        %v1939 = vpop.f32.mrb[0].mxu0
        %v1940 = vadd.f32 %v1859, %v1939
        %v1941 = vpop.f32.mrb[0].mxu0
        %v1942 = vpop.f32.mrb[0].mxu0
        %v1943 = vadd.f32 %v1859, %v1942
        %v1944 = vpop.f32.mrb[0].mxu0
        %1945 = vmatprep.mubr.bf16.mxu0 0
        %1946 = vmatmul.mubr.bf16.gmra.mrb[0].mxu0 %v1880
        %v1947 = vpop.f32.mrb[0].mxu0
        %v1948 = vadd.f32 %v1859, %v1947
        %v1949 = vpop.f32.mrb[0].mxu0
        %v1950 = vpop.f32.mrb[0].mxu0
        %v1951 = vadd.f32 %v1859, %v1950
        %v1952 = vpop.f32.mrb[0].mxu0
        %1953 = vmatprep.mubr.bf16.mxu0 0
        %1954 = vmatmul.mubr.bf16.gmra.mrb[0].mxu0 %v1883
        %v1955 = vpop.f32.mrb[0].mxu0
        %v1956 = vadd.f32 %v1859, %v1955
        %v1957 = vpop.f32.mrb[0].mxu0
        %v1958 = vpop.f32.mrb[0].mxu0
        %v1959 = vadd.f32 %v1859, %v1958
        %v1960 = vpop.f32.mrb[0].mxu0
        %1961 = vmatprep.mubr.bf16.mxu0 0
        %1962 = vmatmul.mubr.bf16.gmra.mrb[0].mxu0 %v1886
        %v1963 = vpop.f32.mrb[0].mxu0
        %v1964 = vadd.f32 %v1859, %v1963
        %v1965 = vpop.f32.mrb[0].mxu0
        %v1966 = vpop.f32.mrb[0].mxu0
        %v1967 = vadd.f32 %v1859, %v1966
        %v1968 = vpop.f32.mrb[0].mxu0
        %1969 = vmatprep.mubr.bf16.mxu0 0
        %1970 = vmatmul.mubr.bf16.gmra.mrb[0].mxu0 %v1889
        %v1971 = vpop.f32.mrb[0].mxu0
        %v1972 = vadd.f32 %v1859, %v1971
        %v1973 = vpop.f32.mrb[0].mxu0
        %v1974 = vpop.f32.mrb[0].mxu0
        %v1975 = vadd.f32 %v1859, %v1974
        %v1976 = vpop.f32.mrb[0].mxu0
        %1977 = vmatprep.mubr.bf16.mxu0 0
        %1978 = vmatmul.mubr.bf16.gmra.mrb[0].mxu0 %v1892
        %v1979 = vpop.f32.mrb[0].mxu0
        %v1980 = vadd.f32 %v1859, %v1979
        %v1981 = vpop.f32.mrb[0].mxu0
        %v1982 = vpop.f32.mrb[0].mxu0
        %v1983 = vadd.f32 %v1859, %v1982
        %v1984 = vpop.f32.mrb[0].mxu0
        %1985 = vmatprep.mubr.bf16.mxu0 0
        %1986 = vmatmul.mubr.bf16.gmra.mrb[0].mxu0 %v1895
        %v1987 = vpop.f32.mrb[0].mxu0
        %v1988 = vadd.f32 %v1859, %v1987
        %v1989 = vpop.f32.mrb[0].mxu0
        %v1990 = vpop.f32.mrb[0].mxu0
        %v1991 = vadd.f32 %v1859, %v1990
        %v1992 = vpop.f32.mrb[0].mxu0
        %1993 = vdwg.mxu0
        %1994 = vmax.xlane.f32.xlu0 %v1932
        %v1995 = vpop.xlane.xlu0 %1994
        %1996 = vmax.xlane.f32.xlu0 %v1935
        %v1997 = vpop.xlane.xlu0 %1996
        %1998 = vmax.xlane.f32.xlu0 %v1940
        %v1999 = vpop.xlane.xlu0 %1998
        %2000 = vmax.xlane.f32.xlu0 %v1943
        %v2001 = vpop.xlane.xlu0 %2000
        %2002 = vmax.xlane.f32.xlu0 %v1948
        %v2003 = vpop.xlane.xlu0 %2002
        %2004 = vmax.xlane.f32.xlu0 %v1951
        %v2005 = vpop.xlane.xlu0 %2004
        %2006 = vmax.xlane.f32.xlu0 %v1956
        %v2007 = vpop.xlane.xlu0 %2006
        %2008 = vmax.xlane.f32.xlu0 %v1959
        %v2009 = vpop.xlane.xlu0 %2008
        %2010 = vmax.xlane.f32.xlu0 %v1964
        %v2011 = vpop.xlane.xlu0 %2010
        %2012 = vmax.xlane.f32.xlu0 %v1967
        %v2013 = vpop.xlane.xlu0 %2012
        %2014 = vmax.xlane.f32.xlu0 %v1972
        %v2015 = vpop.xlane.xlu0 %2014
        %2016 = vmax.xlane.f32.xlu0 %v1975
        %v2017 = vpop.xlane.xlu0 %2016
        %2018 = vmax.xlane.f32.xlu0 %v1980
        %v2019 = vpop.xlane.xlu0 %2018
        %2020 = vmax.xlane.f32.xlu0 %v1983
        %v2021 = vpop.xlane.xlu0 %2020
        %2022 = vmax.xlane.f32.xlu0 %v1988
        %v2023 = vpop.xlane.xlu0 %2022
        %2024 = vmax.xlane.f32.xlu0 %v1991
        %v2025 = vpop.xlane.xlu0 %2024
        %v2026 = vsub.f32 %v1932, %v1995
        %v2027 = vsub.f32 %v1935, %v1997
        %v2028 = vsub.f32 %v1940, %v1999
        %v2029 = vsub.f32 %v1943, %v2001
        %v2030 = vsub.f32 %v1948, %v2003
        %v2031 = vsub.f32 %v1951, %v2005
        %v2032 = vsub.f32 %v1956, %v2007
        %v2033 = vsub.f32 %v1959, %v2009
        %v2034 = vsub.f32 %v1964, %v2011
        %v2035 = vsub.f32 %v1967, %v2013
        %v2036 = vsub.f32 %v1972, %v2015
        %v2037 = vsub.f32 %v1975, %v2017
        %v2038 = vsub.f32 %v1980, %v2019
        %v2039 = vsub.f32 %v1983, %v2021
        %v2040 = vsub.f32 %v1988, %v2023
        %v2041 = vsub.f32 %v1991, %v2025
        %v2042 = vmul.f32 %v2026, 1.442695
        %v2043 = vpow.pop %v2042
        %v2044 = vmul.f32 %v2027, 1.442695
        %v2045 = vpow.pop %v2044
        %v2046 = vmul.f32 %v2028, 1.442695
        %v2047 = vpow.pop %v2046
        %v2048 = vmul.f32 %v2029, 1.442695
        %v2049 = vpow.pop %v2048
        %v2050 = vmul.f32 %v2030, 1.442695
        %v2051 = vpow.pop %v2050
        %v2052 = vmul.f32 %v2031, 1.442695
        %v2053 = vpow.pop %v2052
        %v2054 = vmul.f32 %v2032, 1.442695
        %v2055 = vpow.pop %v2054
        %v2056 = vmul.f32 %v2033, 1.442695
        %v2057 = vpow.pop %v2056
        %v2058 = vmul.f32 %v2034, 1.442695
        %v2059 = vpow.pop %v2058
        %v2060 = vmul.f32 %v2035, 1.442695
        %v2061 = vpow.pop %v2060
        %v2062 = vmul.f32 %v2036, 1.442695
        %v2063 = vpow.pop %v2062
        %v2064 = vmul.f32 %v2037, 1.442695
        %v2065 = vpow.pop %v2064
        %v2066 = vmul.f32 %v2038, 1.442695
        %v2067 = vpow.pop %v2066
        %v2068 = vmul.f32 %v2039, 1.442695
        %v2069 = vpow.pop %v2068
        %v2070 = vmul.f32 %v2040, 1.442695
        %v2071 = vpow.pop %v2070
        %v2072 = vmul.f32 %v2041, 1.442695
        %v2073 = vpow.pop %v2072
        %2074 = vadd.xlane.f32.xlu0 %v2043
        %v2075 = vpop.xlane.xlu0 %2074
        %2076 = vadd.xlane.f32.xlu0 %v2045
        %v2077 = vpop.xlane.xlu0 %2076
        %2078 = vadd.xlane.f32.xlu0 %v2047
        %v2079 = vpop.xlane.xlu0 %2078
        %2080 = vadd.xlane.f32.xlu0 %v2049
        %v2081 = vpop.xlane.xlu0 %2080
        %2082 = vadd.xlane.f32.xlu0 %v2051
        %v2083 = vpop.xlane.xlu0 %2082
        %2084 = vadd.xlane.f32.xlu0 %v2053
        %v2085 = vpop.xlane.xlu0 %2084
        %2086 = vadd.xlane.f32.xlu0 %v2055
        %v2087 = vpop.xlane.xlu0 %2086
        %2088 = vadd.xlane.f32.xlu0 %v2057
        %v2089 = vpop.xlane.xlu0 %2088
        %2090 = vadd.xlane.f32.xlu0 %v2059
        %v2091 = vpop.xlane.xlu0 %2090
        %2092 = vadd.xlane.f32.xlu0 %v2061
        %v2093 = vpop.xlane.xlu0 %2092
        %2094 = vadd.xlane.f32.xlu0 %v2063
        %v2095 = vpop.xlane.xlu0 %2094
        %2096 = vadd.xlane.f32.xlu0 %v2065
        %v2097 = vpop.xlane.xlu0 %2096
        %2098 = vadd.xlane.f32.xlu0 %v2067
        %v2099 = vpop.xlane.xlu0 %2098
        %2100 = vadd.xlane.f32.xlu0 %v2069
        %v2101 = vpop.xlane.xlu0 %2100
        %2102 = vadd.xlane.f32.xlu0 %v2071
        %v2103 = vpop.xlane.xlu0 %2102
        %2104 = vadd.xlane.f32.xlu0 %v2073
        %v2105 = vpop.xlane.xlu0 %2104
        %v2106 = vlog2.pop %v2075
        %v2107 = vmul.f32 %v2106, 0.6931472
        %v2108 = vlog2.pop %v2077
        %v2109 = vmul.f32 %v2108, 0.6931472
        %v2110 = vlog2.pop %v2079
        %v2111 = vmul.f32 %v2110, 0.6931472
        %v2112 = vlog2.pop %v2081
        %v2113 = vmul.f32 %v2112, 0.6931472
        %v2114 = vlog2.pop %v2083
        %v2115 = vmul.f32 %v2114, 0.6931472
        %v2116 = vlog2.pop %v2085
        %v2117 = vmul.f32 %v2116, 0.6931472
        %v2118 = vlog2.pop %v2087
        %v2119 = vmul.f32 %v2118, 0.6931472
        %v2120 = vlog2.pop %v2089
        %v2121 = vmul.f32 %v2120, 0.6931472
        %v2122 = vlog2.pop %v2091
        %v2123 = vmul.f32 %v2122, 0.6931472
        %v2124 = vlog2.pop %v2093
        %v2125 = vmul.f32 %v2124, 0.6931472
        %v2126 = vlog2.pop %v2095
        %v2127 = vmul.f32 %v2126, 0.6931472
        %v2128 = vlog2.pop %v2097
        %v2129 = vmul.f32 %v2128, 0.6931472
        %v2130 = vlog2.pop %v2099
        %v2131 = vmul.f32 %v2130, 0.6931472
        %v2132 = vlog2.pop %v2101
        %v2133 = vmul.f32 %v2132, 0.6931472
        %v2134 = vlog2.pop %v2103
        %v2135 = vmul.f32 %v2134, 0.6931472
        %v2136 = vlog2.pop %v2105
        %v2137 = vmul.f32 %v2136, 0.6931472
        %v2138 = vadd.f32 %v1995, %v2107
        %v2139 = vadd.f32 %v1997, %v2109
        %v2140 = vadd.f32 %v1999, %v2111
        %v2141 = vadd.f32 %v2001, %v2113
        %v2142 = vadd.f32 %v2003, %v2115
        %v2143 = vadd.f32 %v2005, %v2117
        %v2144 = vadd.f32 %v2007, %v2119
        %v2145 = vadd.f32 %v2009, %v2121
        %v2146 = vadd.f32 %v2011, %v2123
        %v2147 = vadd.f32 %v2013, %v2125
        %v2148 = vadd.f32 %v2015, %v2127
        %v2149 = vadd.f32 %v2017, %v2129
        %v2150 = vadd.f32 %v2019, %v2131
        %v2151 = vadd.f32 %v2021, %v2133
        %v2152 = vadd.f32 %v2023, %v2135
        %v2153 = vadd.f32 %v2025, %v2137
        %v2154 = vsub.f32 %v1932, %v2138
        %v2155 = vsub.f32 %v1935, %v2139
        %v2156 = vsub.f32 %v1940, %v2140
        %v2157 = vsub.f32 %v1943, %v2141
        %v2158 = vsub.f32 %v1948, %v2142
        %v2159 = vsub.f32 %v1951, %v2143
        %v2160 = vsub.f32 %v1956, %v2144
        %v2161 = vsub.f32 %v1959, %v2145
        %v2162 = vsub.f32 %v1964, %v2146
        %v2163 = vsub.f32 %v1967, %v2147
        %v2164 = vsub.f32 %v1972, %v2148
        %v2165 = vsub.f32 %v1975, %v2149
        %v2166 = vsub.f32 %v1980, %v2150
        %v2167 = vsub.f32 %v1983, %v2151
        %v2168 = vsub.f32 %v1988, %v2152
        %v2169 = vsub.f32 %v1991, %v2153
        %2170 = vst [vmem:[%s356] sm:$0xff] %v2154
        %2171 = vst [vmem:[%s356 + $0x8] sm:$0xff] %v2155
        %2172 = vst [vmem:[%s356 + $0x10] sm:$0xff] %v2156
        %2173 = vst [vmem:[%s356 + $0x18] sm:$0xff] %v2157
        %2174 = vst [vmem:[%s356 + $0x20] sm:$0xff] %v2158
        %2175 = vst [vmem:[%s356 + $0x28] sm:$0xff] %v2159
        %2176 = vst [vmem:[%s356 + $0x30] sm:$0xff] %v2160
        %2177 = vst [vmem:[%s356 + $0x38] sm:$0xff] %v2161
        %2178 = vst [vmem:[%s356 + $0x40] sm:$0xff] %v2162
        %2179 = vst [vmem:[%s356 + $0x48] sm:$0xff] %v2163
        %2180 = vst [vmem:[%s356 + $0x50] sm:$0xff] %v2164
        %2181 = vst [vmem:[%s356 + $0x58] sm:$0xff] %v2165
        %2182 = vst [vmem:[%s356 + $0x60] sm:$0xff] %v2166
        %2183 = vst [vmem:[%s356 + $0x68] sm:$0xff] %v2167
        %2184 = vst [vmem:[%s356 + $0x70] sm:$0xff] %v2168
        %2185 = vst [vmem:[%s356 + $0x78] sm:$0xff] %v2169
        %s2186 = sand.u32 %s212, 1
        %s2187 = scalar_lea.sflag [#allocation4], %s2186
        %s2188 = sand.u32 %s212, 1
        %s2189 = smul.addr %s2188, 128
        %s2190 = scalar_lea.vmem [#allocation7], %s2189
        // Predicated region
        $region61: #{tpu_custom_call.1} parent=51 // pred_check
          %p2191 = pneg %p222
        $region62: #{tpu_custom_call.1} parent=51 // pred_check_branch
          %2193 = sbr.rel (%p2191) target = $region64
        $region63: #{tpu_custom_call.1} parent=51 // pred_region
          %s2194 = smul.u32 2, %s26
          %s2196 = ssub.s32 2048, 2048
          %2197 = vsyncadd %s2187, %s2196
          %s2198 = smul.addr %s2194, 8
          %s2199 = smul.addr %s2198, 128
          %s2200 = scalar_lea.hbm %s8, %s2199
          %s2201 = sshll.u32 %s2190, 4
          %s2202 = int_to_ptr.vmem [resolvable:$true] %s2201
          %2207 = dma.vmem_to_hbm [thread:$0]  %s2202, 2048, %s2200, %s2187, 128, 128, 8
        $region64: #{tpu_custom_call.1} parent=51 // pred_fallthru
          _
      $region52: #{tpu_custom_call.1} parent=5 // pred_fallthru
        _
      %p2208 = scmp.le.s32.totalorder 2, %s21
      // Predicated region
      $region65: #{tpu_custom_call.1} parent=5 // pred_check
        %p2209 = pneg %p2208
      $region66: #{tpu_custom_call.1} parent=5 // pred_check_branch
        %2211 = sbr.rel (%p2209) target = $region68
      $region67: #{tpu_custom_call.1} parent=5 // pred_region
        %s2212 = ssub.s32 %s21, 2
        // Predicated region
        $region69: #{tpu_custom_call.1} parent=67 // pred_check
          %p2213 = pneg %p228
        $region70: #{tpu_custom_call.1} parent=67 // pred_check_branch
          %2215 = sbr.rel (%p2213) target = $region72
        $region71: #{tpu_custom_call.1} parent=67 // pred_region
          %s2216 = sand.u32 %s213, 1
          %s2217 = scalar_lea.sflag [#allocation4], %s2216
          %s2218 = sand.u32 %s213, 1
          %s2219 = smul.addr %s2218, 128
          %s2220 = scalar_lea.vmem [#allocation7], %s2219
          %2221 = dma.done %s2217, 2048
        $region72: #{tpu_custom_call.1} parent=67 // pred_fallthru
          _
      $region68: #{tpu_custom_call.1} parent=5 // pred_fallthru
        _
    $region6: #{tpu_custom_call.1} parent=1 // loop_footer
      %s25 = sadd.s32 1, %s21
    $region7: #{tpu_custom_call.1} parent=1 // loop_footer_branch
      %20 = sbr.rel target = $region3
    $region8: #{tpu_custom_call.1} parent=1 // loop_exit
      _
    %2222 = vsyncpa [#allocation3], 1
    %s2223 = scalar_lea.sflag [#allocation3], 1
    %2224 = vsyncpa %s2223, 1
    %2225 = vsyncpa [#allocation4], 1
    %s2226 = scalar_lea.sflag [#allocation4], 1
    %2227 = vsyncpa %s2226, 1
    %2228 = vsyncpa [#allocation5], 1
    %s2229 = scalar_lea.sflag [#allocation5], 1
    %2230 = vsyncpa %s2229, 1

</llo_original>
